<compile_context>
chip_gen: v7x
topology: tpu7x:2x2x1
jax: 0.10.0
libtpu: 0.0.40
codegen_flags: <defaults>
</compile_context>

<pallas_src>
import functools
import math

import jax
import jax.numpy as jnp
from jax import lax
from jax.experimental import pallas as pl
from jax.experimental.pallas import tpu as pltpu


def _layernorm(x, w, b, eps=1e-5):
    mu = jnp.mean(x, axis=-1, keepdims=True)
    var = jnp.mean((x - mu) ** 2, axis=-1, keepdims=True)
    return (x - mu) * lax.rsqrt(var + eps) * w + b


def decoder_block_kernel(
    x_ref,                       # (1, TQ, D)   f32  (per-tile block)
    ln1_w_ref, ln1_b_ref,        # (1, D)       f32
    wqv_ref,                     # (H, D, 2*dh) bf16  [..,:dh]=Wq^T/sqrt(dh), [..,dh:]=Wv^T
    wk_ref,                      # (H, dh, D)   bf16  (natural layout -> K^T on the MXU)
    wo_ref,                      # (H, dh, D)   bf16  (Wo^T split per head)
    ln2_w_ref, ln2_b_ref,        # (1, D)       f32
    fc1_w_ref, fc1_b_ref,        # (D, 4D) bf16, (1, 4D) f32
    fc2_w_ref, fc2_b_ref,        # (4D, D) bf16, (1, D)  f32
    o_ref,                       # (1, TQ, D)   f32
    kt_scr,                      # (n_kv, H, dh, TQ) bf16  resident K^T tiles
    v_scr,                       # (n_kv, H, TQ, dh) bf16  resident V tiles
    *, n_heads, tq,
):
    D = x_ref.shape[2]
    H = n_heads
    dh = D // H
    qt = pl.program_id(1)

    # ---- sublayer 1: LayerNorm1 + causal MHA on this tile of query rows ----
    x_t = x_ref[0]                                               # (TQ, D) f32
    h_t = _layernorm(x_t, ln1_w_ref[0], ln1_b_ref[0])            # f32 elementwise
    hb = jnp.broadcast_to(h_t.astype(jnp.bfloat16)[None], (H, tq, D))

    # Q/V projection: fused per-head weight -> N = 2*dh MXU columns per matmul.
    qv = jnp.einsum('htd,hdk->htk', hb, wqv_ref[...],
                    preferred_element_type=jnp.float32)          # (H, TQ, 2*dh)
    q_bf = qv[:, :, :dh].astype(jnp.bfloat16)                    # scale folded into Wq
    v_bf = qv[:, :, dh:].astype(jnp.bfloat16)

    # K projection with the weight on the LHS so the MXU emits K^T (H, dh, TQ)
    # directly: no in-kernel transpose, scratch/score lane dimension = TQ.
    kt = jnp.einsum('hkd,htd->hkt', wk_ref[...], hb,
                    preferred_element_type=jnp.float32)
    kt_bf = kt.astype(jnp.bfloat16)

    # K/V of this tile become visible to this and all later q-tiles of the same
    # batch element.  Causality means every slot read below (kv < qt) was
    # already written earlier in the sequential q-tile sweep, so the scratch
    # needs no zero-initialization.
    kt_scr[qt] = kt_bf
    v_scr[qt] = v_bf

    # ---- online softmax over the causal KV tiles ----
    m0 = jnp.full((H, tq, 1), -jnp.inf, dtype=jnp.float32)
    l0 = jnp.zeros((H, tq, 1), dtype=jnp.float32)
    a0 = jnp.zeros((H, tq, dh), dtype=jnp.float32)

    def kv_body(kv, carry):
        m_p, l_p, acc_p = carry
        kt_blk = kt_scr[kv]                                      # (H, dh, TQ) bf16
        v_blk = v_scr[kv]                                        # (H, TQ, dh) bf16
        s = jnp.einsum('htk,hks->hts', q_bf, kt_blk,
                       preferred_element_type=jnp.float32)       # (H, TQ, TKV)
        m_n = jnp.maximum(m_p, jnp.max(s, axis=-1, keepdims=True))
        alpha = jnp.exp(m_p - m_n)
        p = jnp.exp(s - m_n)
        l_n = alpha * l_p + jnp.sum(p, axis=-1, keepdims=True)
        acc_n = alpha * acc_p + jnp.einsum(
            'hts,hsk->htk', p.astype(jnp.bfloat16), v_blk,
            preferred_element_type=jnp.float32)
        return m_n, l_n, acc_n

    # Fully visible KV tiles strictly below the diagonal (no mask needed).
    m_i, l_i, acc = lax.fori_loop(0, qt, kv_body, (m0, l0, a0))

    # Diagonal KV tile: reuse the freshly computed K^T / V, apply causal mask.
    s = jnp.einsum('htk,hks->hts', q_bf, kt_bf,
                   preferred_element_type=jnp.float32)           # (H, TQ, TQ)
    row = lax.broadcasted_iota(jnp.int32, (1, tq, tq), 1)
    col = lax.broadcasted_iota(jnp.int32, (1, tq, tq), 2)
    # NOTE: single-select causal mask intentionally replaces the PyTorch
    # `qkt*mask; qkt[qkt==0]=-inf` trick; it only differs when an in-window
    # score is exactly 0.0.
    s = jnp.where(col <= row, s, -jnp.inf)
    m_n = jnp.maximum(m_i, jnp.max(s, axis=-1, keepdims=True))
    alpha = jnp.exp(m_i - m_n)
    p = jnp.exp(s - m_n)
    l_i = alpha * l_i + jnp.sum(p, axis=-1, keepdims=True)
    acc = alpha * acc + jnp.einsum('hts,hsk->htk', p.astype(jnp.bfloat16), v_bf,
                                   preferred_element_type=jnp.float32)

    ctx = acc * pl.reciprocal(l_i, approx=True)                  # (H, TQ, dh) f32
    ctx_bf = ctx.astype(jnp.bfloat16)

    # Output projection: per-head 2-D dots accumulated into one (TQ, D) f32
    # buffer -- head concat and cross-head sum never materialize (H, TQ, D).
    attn_out = jnp.dot(ctx_bf[0], wo_ref[0], preferred_element_type=jnp.float32)
    for h in range(1, H):                                        # static unroll
        attn_out = attn_out + jnp.dot(ctx_bf[h], wo_ref[h],
                                      preferred_element_type=jnp.float32)

    x1 = x_t + attn_out

    # ---- sublayer 2: LayerNorm2 + MLP on the same rows ----
    h2 = _layernorm(x1, ln2_w_ref[0], ln2_b_ref[0])
    f = jnp.dot(h2.astype(jnp.bfloat16), fc1_w_ref[...],
                preferred_element_type=jnp.float32) + fc1_b_ref[0]
    f = jnp.maximum(f, 0.0)
    y = jnp.dot(f.astype(jnp.bfloat16), fc2_w_ref[...],
                preferred_element_type=jnp.float32) + fc2_b_ref[0]
    # TODO(synk): torch.nn.Dropout(0.1) is stochastic in training mode; eval-mode
    #             identity is used here (would need pltpu.prng_seed/prng_random_bits).
    # TODO(synk): for large D on v7x (64 MiB VMEM/TC) the resident bf16 FC weights
    #             (16*D^2 bytes) should be tiled over the 4D hidden axis.

    o_ref[0] = x1 + y


def _prep_weights(params, n_heads):
    """Pre-arrange weights once (bf16) so the kernel never transposes / rescales."""
    D = params["wo_w"].shape[0]
    H = n_heads
    dh = D // H
    qkv = params["qkv_w"]                                   # (3D, D): rows [Wq; Wk; Wv]
    wq = qkv[0 * D:1 * D].reshape(H, dh, D)
    wk = qkv[1 * D:2 * D].reshape(H, dh, D)
    wv = qkv[2 * D:3 * D].reshape(H, dh, D)
    scale = 1.0 / math.sqrt(float(dh))
    # Fused per-head Q|V weight, transposed to (D, 2*dh); softmax scale folded into Wq.
    wqv = jnp.concatenate([jnp.transpose(wq, (0, 2, 1)) * scale,
                           jnp.transpose(wv, (0, 2, 1))], axis=-1).astype(jnp.bfloat16)
    wk_b = wk.astype(jnp.bfloat16)                          # natural (H, dh, D): K^T on MXU
    wo = params["wo_w"].T.reshape(H, dh, D).astype(jnp.bfloat16)
    fc1_wt = params["fc1_w"].T.astype(jnp.bfloat16)         # (D, 4D)
    fc2_wt = params["fc2_w"].T.astype(jnp.bfloat16)         # (4D, D)
    return wqv, wk_b, wo, fc1_wt, fc2_wt


def _tpu_vmem_capacity():
    try:
        return int(pltpu.get_tpu_info().vmem_capacity_bytes)
    except Exception:
        return 64 << 20                                     # conservative (v7x per-TC)


def _pick_tq(S):
    if S <= 128:
        return S
    kind = ""
    try:
        kind = jax.devices()[0].device_kind.lower()
    except Exception:
        pass
    is_v5e = ("v5 lite" in kind) or ("v5e" in kind) or ("v5litepod" in kind)
    for cand in ((128, 256) if is_v5e else (256, 128)):
        if S % cand == 0:
            return cand
    return S


def _vmem_limit_bytes(S, D, H, tq, n_qt):
    dh = D // H
    f32, bf16 = 4, 2
    io = 2 * 2 * tq * D * f32                               # x tile + out tile (dbl-buffered)
    weights = (H * D * 2 * dh + 2 * H * dh * D + 8 * D * D) * bf16
    params_small = 16 * D * f32                              # LN params + biases
    scratch = 2 * n_qt * H * tq * dh * bf16                  # kt_scr + v_scr (= 4*S*D bytes)
    transients = (H * tq * D * bf16                          # broadcast activations
                  + H * tq * (2 * dh + tq) * f32             # QV proj + one (TQ,TQ) score tile
                  + H * tq * tq * f32                        # exp(p)
                  + 2 * H * tq * dh * f32                    # K^T + running acc
                  + tq * 4 * D * f32                         # MLP hidden
                  + 4 * tq * D * f32)                        # misc row tiles
    total = io + 2 * weights + params_small + scratch + transients
    cap = _tpu_vmem_capacity()
    return int(min(max(total + (4 << 20), 32 << 20), cap - (2 << 20)))


def transformer_decoder_block(x, params, n_heads, tq=None):
    """x: (B, S, D) float32. params: dict of f32 weights (see init_params)."""
    B, S, D = x.shape
    H = n_heads
    dh = D // H

    if tq is None:
        tq = _pick_tq(S)
    assert S % tq == 0
    n_qt = S // tq

    wqv, wk, wo, fc1_wt, fc2_wt = _prep_weights(params, n_heads)

    def const(shape):                   # whole-array block, same block every step
        return pl.BlockSpec(shape, lambda b, t: (0,) * len(shape))

    in_specs = [
        pl.BlockSpec((1, tq, D), lambda b, t: (b, t, 0)),   # x: one q-tile per grid step
        const((1, D)), const((1, D)),                       # ln1 w, b
        const((H, D, 2 * dh)),                              # fused (scaled Wq | Wv)
        const((H, dh, D)),                                  # Wk (natural layout)
        const((H, dh, D)),                                  # Wo^T per head
        const((1, D)), const((1, D)),                       # ln2 w, b
        const((D, 4 * D)), const((1, 4 * D)),               # fc1 w^T, b
        const((4 * D, D)), const((1, D)),                   # fc2 w^T, b
    ]

    kernel = functools.partial(decoder_block_kernel, n_heads=H, tq=tq)
    return pl.pallas_call(
        kernel,
        out_shape=jax.ShapeDtypeStruct((B, S, D), jnp.float32),
        grid_spec=pltpu.PrefetchScalarGridSpec(
            num_scalar_prefetch=0,
            grid=(B, n_qt),
            in_specs=in_specs,
            out_specs=pl.BlockSpec((1, tq, D), lambda b, t: (b, t, 0)),
            scratch_shapes=[pltpu.VMEM((n_qt, H, dh, tq), jnp.bfloat16),
                            pltpu.VMEM((n_qt, H, tq, dh), jnp.bfloat16)],
        ),
        compiler_params=pltpu.CompilerParams(
            # The K/V-scratch carry relies on the q-tile axis being sequential
            # ("arbitrary"); only the batch axis is megacore-parallel.
            # TODO(synk): add a head-group parallel axis for v7x when B is tiny.
            dimension_semantics=("parallel", "arbitrary"),
            vmem_limit_bytes=_vmem_limit_bytes(S, D, H, tq, n_qt),
        ),
    )(
        x,
        params["ln1_w"], params["ln1_b"],
        wqv, wk, wo,
        params["ln2_w"], params["ln2_b"],
        fc1_wt, params["fc1_b"],
        fc2_wt, params["fc2_b"],
    )


def init_params(key, d_model, n_heads):
    k_qkv, k_wo, k_fc1, k_fc2 = jax.random.split(key, 4)
    D = d_model
    return {
        "ln1_w": jnp.ones((1, D), jnp.float32),
        "ln1_b": jnp.zeros((1, D), jnp.float32),
        "qkv_w": 0.01 * jax.random.normal(k_qkv, (3 * D, D), jnp.float32),
        "wo_w": 0.01 * jax.random.normal(k_wo, (D, D), jnp.float32),
        "ln2_w": jnp.ones((1, D), jnp.float32),
        "ln2_b": jnp.zeros((1, D), jnp.float32),
        "fc1_w": 0.01 * jax.random.normal(k_fc1, (4 * D, D), jnp.float32),
        "fc1_b": jnp.zeros((1, 4 * D), jnp.float32),
        "fc2_w": 0.01 * jax.random.normal(k_fc2, (D, 4 * D), jnp.float32),
        "fc2_b": jnp.zeros((1, D), jnp.float32),
    }


def reference_block(x, params, n_heads):
    """Pure-JAX f32 reference matching the PyTorch forward (eval mode)."""
    B, S, D = x.shape
    dh = D // n_heads

    def ln(z, w, b):
        mu = jnp.mean(z, -1, keepdims=True)
        var = jnp.mean((z - mu) ** 2, -1, keepdims=True)
        return (z - mu) / jnp.sqrt(var + 1e-5) * w[0] + b[0]

    h = ln(x, params["ln1_w"], params["ln1_b"])
    qkv = h @ params["qkv_w"].T
    q, k, v = jnp.split(qkv, 3, -1)
    qh = q.reshape(B, S, n_heads, dh).transpose(0, 2, 1, 3)
    kh = k.reshape(B, S, n_heads, dh).transpose(0, 2, 1, 3)
    vh = v.reshape(B, S, n_heads, dh).transpose(0, 2, 1, 3)
    scores = jnp.einsum("bhqd,bhkd->bhqk", qh, kh) / math.sqrt(float(dh))
    mask = jnp.tril(jnp.ones((S, S)))[None, None]
    scores = scores * mask
    scores = jnp.where(scores == 0.0, -jnp.inf, scores)
    attn = jax.nn.softmax(scores, -1)
    o = jnp.einsum("bhqk,bhkd->bhqd", attn, vh).transpose(0, 2, 1, 3).reshape(B, S, D)
    x = x + o @ params["wo_w"].T
    h2 = ln(x, params["ln2_w"], params["ln2_b"])
    f = jnp.maximum(h2 @ params["fc1_w"].T + params["fc1_b"][0], 0.0)
    f = f @ params["fc2_w"].T + params["fc2_b"][0]
    return x + f


if __name__ == "__main__":
    B, S, D, NH = 2, 8, 32, 4
    key = jax.random.PRNGKey(0)
    k_x, k_p = jax.random.split(key)
    x = jax.random.normal(k_x, (B, S, D), jnp.float32)
    params = init_params(k_p, D, NH)

    out = jax.block_until_ready(transformer_decoder_block(x, params, NH))
    ref = reference_block(x, params, NH)

    assert out.shape == (B, S, D)
    err = float(jnp.max(jnp.abs(out - ref)))
    # bf16 MXU inputs + online softmax + approx reciprocal => looser tolerance than f32.
    assert err < 5e-3, f"max err {err}"
    print("KERNEL_OK")
</pallas_src>

<mosaic_0001>
module attributes {stable_mosaic.version = 11 : i64} {
  func.func @decoder_block_kernel(%arg0: i32, %arg1: i32, %arg2: memref<1x8x32xf32, #tpu.memory_space<vmem>>, %arg3: memref<1x32xf32, #tpu.memory_space<vmem>>, %arg4: memref<1x32xf32, #tpu.memory_space<vmem>>, %arg5: memref<4x32x16xbf16, #tpu.memory_space<vmem>>, %arg6: memref<4x8x32xbf16, #tpu.memory_space<vmem>>, %arg7: memref<4x8x32xbf16, #tpu.memory_space<vmem>>, %arg8: memref<1x32xf32, #tpu.memory_space<vmem>>, %arg9: memref<1x32xf32, #tpu.memory_space<vmem>>, %arg10: memref<32x128xbf16, #tpu.memory_space<vmem>>, %arg11: memref<1x128xf32, #tpu.memory_space<vmem>>, %arg12: memref<128x32xbf16, #tpu.memory_space<vmem>>, %arg13: memref<1x32xf32, #tpu.memory_space<vmem>>, %arg14: memref<1x8x32xf32, #tpu.memory_space<vmem>>, %arg15: memref<1x4x8x8xbf16, #tpu.memory_space<vmem>>, %arg16: memref<1x4x8x8xbf16, #tpu.memory_space<vmem>>) attributes {dimension_semantics = [#tpu.dimension_semantics<parallel>, #tpu.dimension_semantics<arbitrary>], iteration_bounds = array<i64: 2, 1>, scalar_prefetch = 0 : i64, scratch_operands = 2 : i64, tpu.core_type = #tpu.core_type<tc>, window_params = [{transform_indices = @transform_0, window_bounds = array<i64: 1, 8, 32>}, {pipeline_mode = #tpu.pipeline_mode<synchronous>, transform_indices = @transform_1, window_bounds = array<i64: 1, 32>}, {pipeline_mode = #tpu.pipeline_mode<synchronous>, transform_indices = @transform_2, window_bounds = array<i64: 1, 32>}, {pipeline_mode = #tpu.pipeline_mode<synchronous>, transform_indices = @transform_3, window_bounds = array<i64: 4, 32, 16>}, {pipeline_mode = #tpu.pipeline_mode<synchronous>, transform_indices = @transform_4, window_bounds = array<i64: 4, 8, 32>}, {pipeline_mode = #tpu.pipeline_mode<synchronous>, transform_indices = @transform_5, window_bounds = array<i64: 4, 8, 32>}, {pipeline_mode = #tpu.pipeline_mode<synchronous>, transform_indices = @transform_6, window_bounds = array<i64: 1, 32>}, {pipeline_mode = #tpu.pipeline_mode<synchronous>, transform_indices = @transform_7, window_bounds = array<i64: 1, 32>}, {pipeline_mode = #tpu.pipeline_mode<synchronous>, transform_indices = @transform_8, window_bounds = array<i64: 32, 128>}, {pipeline_mode = #tpu.pipeline_mode<synchronous>, transform_indices = @transform_9, window_bounds = array<i64: 1, 128>}, {pipeline_mode = #tpu.pipeline_mode<synchronous>, transform_indices = @transform_10, window_bounds = array<i64: 128, 32>}, {pipeline_mode = #tpu.pipeline_mode<synchronous>, transform_indices = @transform_11, window_bounds = array<i64: 1, 32>}, {transform_indices = @transform_12, window_bounds = array<i64: 1, 8, 32>}]} {
    %c0 = arith.constant 0 : index
    %c0_0 = arith.constant 0 : index
    %c0_1 = arith.constant 0 : index
    %0 = vector.load %arg2[%c0, %c0_0, %c0_1] : memref<1x8x32xf32, #tpu.memory_space<vmem>>, vector<1x8x32xf32>
    %1 = vector.shape_cast %0 : vector<1x8x32xf32> to vector<8x32xf32>
    %c0_2 = arith.constant 0 : index
    %c0_3 = arith.constant 0 : index
    %2 = vector.load %arg3[%c0_2, %c0_3] : memref<1x32xf32, #tpu.memory_space<vmem>>, vector<1x32xf32>
    %3 = vector.shape_cast %2 : vector<1x32xf32> to vector<32xf32>
    %c0_4 = arith.constant 0 : index
    %c0_5 = arith.constant 0 : index
    %4 = vector.load %arg4[%c0_4, %c0_5] : memref<1x32xf32, #tpu.memory_space<vmem>>, vector<1x32xf32>
    %5 = vector.shape_cast %4 : vector<1x32xf32> to vector<32xf32>
    %cst = arith.constant dense<0.000000e+00> : vector<8xf32>
    %6 = vector.multi_reduction <add>, %1, %cst [1] : vector<8x32xf32> to vector<8xf32>
    %7 = vector.shape_cast %6 : vector<8xf32> to vector<8x1xf32>
    %cst_6 = arith.constant 3.200000e+01 : f32
    %8 = vector.broadcast %cst_6 : f32 to vector<8x1xf32>
    %9 = arith.divf %7, %8 : vector<8x1xf32>
    %10 = vector.broadcast %9 : vector<8x1xf32> to vector<8x32xf32>
    %11 = arith.subf %1, %10 : vector<8x32xf32>
    %12 = arith.mulf %11, %11 : vector<8x32xf32>
    %cst_7 = arith.constant dense<0.000000e+00> : vector<8xf32>
    %13 = vector.multi_reduction <add>, %12, %cst_7 [1] : vector<8x32xf32> to vector<8xf32>
    %14 = vector.shape_cast %13 : vector<8xf32> to vector<8x1xf32>
    %cst_8 = arith.constant 3.200000e+01 : f32
    %15 = vector.broadcast %cst_8 : f32 to vector<8x1xf32>
    %16 = arith.divf %14, %15 : vector<8x1xf32>
    %17 = vector.broadcast %9 : vector<8x1xf32> to vector<8x32xf32>
    %18 = arith.subf %1, %17 : vector<8x32xf32>
    %cst_9 = arith.constant 9.99999974E-6 : f32
    %19 = vector.broadcast %cst_9 : f32 to vector<8x1xf32>
    %20 = arith.addf %16, %19 : vector<8x1xf32>
    %21 = math.rsqrt %20 : vector<8x1xf32>
    %22 = vector.broadcast %21 : vector<8x1xf32> to vector<8x32xf32>
    %23 = arith.mulf %18, %22 : vector<8x32xf32>
    %24 = vector.shape_cast %3 : vector<32xf32> to vector<1x32xf32>
    %25 = vector.broadcast %24 : vector<1x32xf32> to vector<8x32xf32>
    %26 = arith.mulf %23, %25 : vector<8x32xf32>
    %27 = vector.shape_cast %5 : vector<32xf32> to vector<1x32xf32>
    %28 = vector.broadcast %27 : vector<1x32xf32> to vector<8x32xf32>
    %29 = arith.addf %26, %28 : vector<8x32xf32>
    %30 = arith.truncf %29 : vector<8x32xf32> to vector<8x32xbf16>
    %31 = vector.shape_cast %30 : vector<8x32xbf16> to vector<1x8x32xbf16>
    %32 = vector.shape_cast %31 : vector<1x8x32xbf16> to vector<1x8x32xbf16>
    %33 = vector.broadcast %32 : vector<1x8x32xbf16> to vector<4x8x32xbf16>
    %c0_10 = arith.constant 0 : index
    %c0_11 = arith.constant 0 : index
    %c0_12 = arith.constant 0 : index
    %34 = vector.load %arg5[%c0_10, %c0_11, %c0_12] : memref<4x32x16xbf16, #tpu.memory_space<vmem>>, vector<4x32x16xbf16>
    "tpu.trace_start"() <{level = 10 : i32, message = "htd,hdk->htk"}> : () -> ()
    %cst_13 = arith.constant dense<0.000000e+00> : vector<4x8x16xf32>
    %35 = tpu.matmul %33, %34, %cst_13 {dimension_numbers = #tpu.dot_dimension_numbers<[2], [1], [1], [2], [0, 0, 0, 1, 1, 2], [0], [0]>} : vector<4x8x32xbf16>, vector<4x32x16xbf16>, vector<4x8x16xf32> -> vector<4x8x16xf32>
    "tpu.trace_stop"() : () -> ()
    %36 = vector.extract_strided_slice %35 {offsets = [0, 0, 0], sizes = [4, 8, 8], strides = [1, 1, 1]} : vector<4x8x16xf32> to vector<4x8x8xf32>
    %37 = arith.truncf %36 : vector<4x8x8xf32> to vector<4x8x8xbf16>
    %38 = vector.extract_strided_slice %35 {offsets = [0, 0, 8], sizes = [4, 8, 8], strides = [1, 1, 1]} : vector<4x8x16xf32> to vector<4x8x8xf32>
    %39 = arith.truncf %38 : vector<4x8x8xf32> to vector<4x8x8xbf16>
    %c0_14 = arith.constant 0 : index
    %c0_15 = arith.constant 0 : index
    %c0_16 = arith.constant 0 : index
    %40 = vector.load %arg6[%c0_14, %c0_15, %c0_16] : memref<4x8x32xbf16, #tpu.memory_space<vmem>>, vector<4x8x32xbf16>
    "tpu.trace_start"() <{level = 10 : i32, message = "hkd,htd->hkt"}> : () -> ()
    %cst_17 = arith.constant dense<0.000000e+00> : vector<4x8x8xf32>
    %41 = tpu.matmul %40, %33, %cst_17 {dimension_numbers = #tpu.dot_dimension_numbers<[2], [2], [1], [1], [0, 0, 0, 1, 1, 1], [0], [0]>} : vector<4x8x32xbf16>, vector<4x8x32xbf16>, vector<4x8x8xf32> -> vector<4x8x8xf32>
    "tpu.trace_stop"() : () -> ()
    %42 = arith.truncf %41 : vector<4x8x8xf32> to vector<4x8x8xbf16>
    %43 = arith.index_cast %arg1 : i32 to index
    %c0_18 = arith.constant 0 : index
    %c0_19 = arith.constant 0 : index
    %c0_20 = arith.constant 0 : index
    %44 = vector.load %arg15[%43, %c0_18, %c0_19, %c0_20] : memref<1x4x8x8xbf16, #tpu.memory_space<vmem>>, vector<1x4x8x8xbf16>
    %45 = vector.shape_cast %44 : vector<1x4x8x8xbf16> to vector<4x8x8xbf16>
    %46 = vector.shape_cast %42 : vector<4x8x8xbf16> to vector<1x4x8x8xbf16>
    tpu.vector_store %arg15[%43, %c0_18, %c0_19, %c0_20], %46 {strides = array<i32>} : memref<1x4x8x8xbf16, #tpu.memory_space<vmem>>, vector<1x4x8x8xbf16>,
    %47 = arith.index_cast %arg1 : i32 to index
    %c0_21 = arith.constant 0 : index
    %c0_22 = arith.constant 0 : index
    %c0_23 = arith.constant 0 : index
    %48 = vector.load %arg16[%47, %c0_21, %c0_22, %c0_23] : memref<1x4x8x8xbf16, #tpu.memory_space<vmem>>, vector<1x4x8x8xbf16>
    %49 = vector.shape_cast %48 : vector<1x4x8x8xbf16> to vector<4x8x8xbf16>
    %50 = vector.shape_cast %39 : vector<4x8x8xbf16> to vector<1x4x8x8xbf16>
    tpu.vector_store %arg16[%47, %c0_21, %c0_22, %c0_23], %50 {strides = array<i32>} : memref<1x4x8x8xbf16, #tpu.memory_space<vmem>>, vector<1x4x8x8xbf16>,
    %cst_24 = arith.constant 0xFF800000 : f32
    %51 = vector.broadcast %cst_24 : f32 to vector<4x8x1xf32>
    %cst_25 = arith.constant 0.000000e+00 : f32
    %52 = vector.broadcast %cst_25 : f32 to vector<4x8x1xf32>
    %cst_26 = arith.constant 0.000000e+00 : f32
    %53 = vector.broadcast %cst_26 : f32 to vector<4x8x8xf32>
    %c0_i32 = arith.constant 0 : i32
    %54 = arith.subi %arg1, %c0_i32 : i32
    %55 = arith.addi %c0_i32, %54 : i32
    %c1_i32 = arith.constant 1 : i32
    %56:3 = scf.for %arg17 = %c0_i32 to %55 step %c1_i32 iter_args(%arg18 = %51, %arg19 = %52, %arg20 = %53) -> (vector<4x8x1xf32>, vector<4x8x1xf32>, vector<4x8x8xf32>)  : i32 {
      %160 = arith.index_cast %arg17 : i32 to index
      %c0_68 = arith.constant 0 : index
      %c0_69 = arith.constant 0 : index
      %c0_70 = arith.constant 0 : index
      %161 = vector.load %arg15[%160, %c0_68, %c0_69, %c0_70] : memref<1x4x8x8xbf16, #tpu.memory_space<vmem>>, vector<1x4x8x8xbf16>
      %162 = vector.shape_cast %161 : vector<1x4x8x8xbf16> to vector<4x8x8xbf16>
      %163 = arith.index_cast %arg17 : i32 to index
      %c0_71 = arith.constant 0 : index
      %c0_72 = arith.constant 0 : index
      %c0_73 = arith.constant 0 : index
      %164 = vector.load %arg16[%163, %c0_71, %c0_72, %c0_73] : memref<1x4x8x8xbf16, #tpu.memory_space<vmem>>, vector<1x4x8x8xbf16>
      %165 = vector.shape_cast %164 : vector<1x4x8x8xbf16> to vector<4x8x8xbf16>
      "tpu.trace_start"() <{level = 10 : i32, message = "htk,hks->hts"}> : () -> ()
      %cst_74 = arith.constant dense<0.000000e+00> : vector<4x8x8xf32>
      %166 = tpu.matmul %37, %162, %cst_74 {dimension_numbers = #tpu.dot_dimension_numbers<[2], [1], [1], [2], [0, 0, 0, 1, 1, 2], [0], [0]>} : vector<4x8x8xbf16>, vector<4x8x8xbf16>, vector<4x8x8xf32> -> vector<4x8x8xf32>
      "tpu.trace_stop"() : () -> ()
      %cst_75 = arith.constant dense<0xFF800000> : vector<4x8xf32>
      %167 = vector.multi_reduction <maximumf>, %166, %cst_75 [2] : vector<4x8x8xf32> to vector<4x8xf32>
      %168 = vector.shape_cast %167 : vector<4x8xf32> to vector<4x8x1xf32>
      %169 = arith.maximumf %arg18, %168 : vector<4x8x1xf32>
      %170 = arith.subf %arg18, %169 : vector<4x8x1xf32>
      %171 = math.exp %170 : vector<4x8x1xf32>
      %172 = vector.broadcast %169 : vector<4x8x1xf32> to vector<4x8x8xf32>
      %173 = arith.subf %166, %172 : vector<4x8x8xf32>
      %174 = math.exp %173 : vector<4x8x8xf32>
      %175 = arith.mulf %171, %arg19 : vector<4x8x1xf32>
      %cst_76 = arith.constant dense<0.000000e+00> : vector<4x8xf32>
      %176 = vector.multi_reduction <add>, %174, %cst_76 [2] : vector<4x8x8xf32> to vector<4x8xf32>
      %177 = vector.shape_cast %176 : vector<4x8xf32> to vector<4x8x1xf32>
      %178 = arith.addf %175, %177 : vector<4x8x1xf32>
      %179 = vector.broadcast %171 : vector<4x8x1xf32> to vector<4x8x8xf32>
      %180 = arith.mulf %179, %arg20 : vector<4x8x8xf32>
      %181 = arith.truncf %174 : vector<4x8x8xf32> to vector<4x8x8xbf16>
      "tpu.trace_start"() <{level = 10 : i32, message = "hts,hsk->htk"}> : () -> ()
      %cst_77 = arith.constant dense<0.000000e+00> : vector<4x8x8xf32>
      %182 = tpu.matmul %181, %165, %cst_77 {dimension_numbers = #tpu.dot_dimension_numbers<[2], [1], [1], [2], [0, 0, 0, 1, 1, 2], [0], [0]>} : vector<4x8x8xbf16>, vector<4x8x8xbf16>, vector<4x8x8xf32> -> vector<4x8x8xf32>
      "tpu.trace_stop"() : () -> ()
      %183 = arith.addf %180, %182 : vector<4x8x8xf32>
      scf.yield %169, %178, %183 : vector<4x8x1xf32>, vector<4x8x1xf32>, vector<4x8x8xf32>
    }
    "tpu.trace_start"() <{level = 10 : i32, message = "htk,hks->hts"}> : () -> ()
    %cst_27 = arith.constant dense<0.000000e+00> : vector<4x8x8xf32>
    %57 = tpu.matmul %37, %42, %cst_27 {dimension_numbers = #tpu.dot_dimension_numbers<[2], [1], [1], [2], [0, 0, 0, 1, 1, 2], [0], [0]>} : vector<4x8x8xbf16>, vector<4x8x8xbf16>, vector<4x8x8xf32> -> vector<4x8x8xf32>
    "tpu.trace_stop"() : () -> ()
    %58 = tpu.iota {dimensions = array<i32: 1>} : vector<1x8x8xi32>
    %59 = tpu.iota {dimensions = array<i32: 2>} : vector<1x8x8xi32>
    %60 = arith.cmpi sle, %59, %58 : vector<1x8x8xi32>
    %cst_28 = arith.constant 0xFF800000 : f32
    %61 = vector.shape_cast %60 : vector<1x8x8xi1> to vector<1x8x8xi1>
    %62 = vector.broadcast %61 : vector<1x8x8xi1> to vector<4x8x8xi1>
    %63 = vector.broadcast %cst_28 : f32 to vector<4x8x8xf32>
    %64 = arith.select %62, %57, %63 : vector<4x8x8xi1>, vector<4x8x8xf32>
    %cst_29 = arith.constant dense<0xFF800000> : vector<4x8xf32>
    %65 = vector.multi_reduction <maximumf>, %64, %cst_29 [2] : vector<4x8x8xf32> to vector<4x8xf32>
    %66 = vector.shape_cast %65 : vector<4x8xf32> to vector<4x8x1xf32>
    %67 = arith.maximumf %56#0, %66 : vector<4x8x1xf32>
    %68 = arith.subf %56#0, %67 : vector<4x8x1xf32>
    %69 = math.exp %68 : vector<4x8x1xf32>
    %70 = vector.broadcast %67 : vector<4x8x1xf32> to vector<4x8x8xf32>
    %71 = arith.subf %64, %70 : vector<4x8x8xf32>
    %72 = math.exp %71 : vector<4x8x8xf32>
    %73 = arith.mulf %69, %56#1 : vector<4x8x1xf32>
    %cst_30 = arith.constant dense<0.000000e+00> : vector<4x8xf32>
    %74 = vector.multi_reduction <add>, %72, %cst_30 [2] : vector<4x8x8xf32> to vector<4x8xf32>
    %75 = vector.shape_cast %74 : vector<4x8xf32> to vector<4x8x1xf32>
    %76 = arith.addf %73, %75 : vector<4x8x1xf32>
    %77 = vector.broadcast %69 : vector<4x8x1xf32> to vector<4x8x8xf32>
    %78 = arith.mulf %77, %56#2 : vector<4x8x8xf32>
    %79 = arith.truncf %72 : vector<4x8x8xf32> to vector<4x8x8xbf16>
    "tpu.trace_start"() <{level = 10 : i32, message = "hts,hsk->htk"}> : () -> ()
    %cst_31 = arith.constant dense<0.000000e+00> : vector<4x8x8xf32>
    %80 = tpu.matmul %79, %39, %cst_31 {dimension_numbers = #tpu.dot_dimension_numbers<[2], [1], [1], [2], [0, 0, 0, 1, 1, 2], [0], [0]>} : vector<4x8x8xbf16>, vector<4x8x8xbf16>, vector<4x8x8xf32> -> vector<4x8x8xf32>
    "tpu.trace_stop"() : () -> ()
    %81 = arith.addf %78, %80 : vector<4x8x8xf32>
    %82 = tpu.reciprocal %76 {approx = true} : vector<4x8x1xf32> -> vector<4x8x1xf32>
    %83 = vector.broadcast %82 : vector<4x8x1xf32> to vector<4x8x8xf32>
    %84 = arith.mulf %81, %83 : vector<4x8x8xf32>
    %85 = arith.truncf %84 : vector<4x8x8xf32> to vector<4x8x8xbf16>
    %86 = vector.extract_strided_slice %85 {offsets = [0, 0, 0], sizes = [1, 8, 8], strides = [1, 1, 1]} : vector<4x8x8xbf16> to vector<1x8x8xbf16>
    %87 = vector.shape_cast %86 : vector<1x8x8xbf16> to vector<8x8xbf16>
    %c0_32 = arith.constant 0 : index
    %c0_33 = arith.constant 0 : index
    %c0_34 = arith.constant 0 : index
    %88 = vector.load %arg7[%c0_32, %c0_33, %c0_34] : memref<4x8x32xbf16, #tpu.memory_space<vmem>>, vector<1x8x32xbf16>
    %89 = vector.shape_cast %88 : vector<1x8x32xbf16> to vector<8x32xbf16>
    %cst_35 = arith.constant dense<0.000000e+00> : vector<8x32xf32>
    %90 = tpu.matmul %87, %89, %cst_35 {dimension_numbers = #tpu.dot_dimension_numbers<[1], [0], [0], [1], [0, 0, 1, 1], [], []>} : vector<8x8xbf16>, vector<8x32xbf16>, vector<8x32xf32> -> vector<8x32xf32>
    %91 = vector.extract_strided_slice %85 {offsets = [1, 0, 0], sizes = [1, 8, 8], strides = [1, 1, 1]} : vector<4x8x8xbf16> to vector<1x8x8xbf16>
    %92 = vector.shape_cast %91 : vector<1x8x8xbf16> to vector<8x8xbf16>
    %c1 = arith.constant 1 : index
    %c0_36 = arith.constant 0 : index
    %c0_37 = arith.constant 0 : index
    %93 = vector.load %arg7[%c1, %c0_36, %c0_37] : memref<4x8x32xbf16, #tpu.memory_space<vmem>>, vector<1x8x32xbf16>
    %94 = vector.shape_cast %93 : vector<1x8x32xbf16> to vector<8x32xbf16>
    %cst_38 = arith.constant dense<0.000000e+00> : vector<8x32xf32>
    %95 = tpu.matmul %92, %94, %cst_38 {dimension_numbers = #tpu.dot_dimension_numbers<[1], [0], [0], [1], [0, 0, 1, 1], [], []>} : vector<8x8xbf16>, vector<8x32xbf16>, vector<8x32xf32> -> vector<8x32xf32>
    %96 = arith.addf %90, %95 : vector<8x32xf32>
    %97 = vector.extract_strided_slice %85 {offsets = [2, 0, 0], sizes = [1, 8, 8], strides = [1, 1, 1]} : vector<4x8x8xbf16> to vector<1x8x8xbf16>
    %98 = vector.shape_cast %97 : vector<1x8x8xbf16> to vector<8x8xbf16>
    %c2 = arith.constant 2 : index
    %c0_39 = arith.constant 0 : index
    %c0_40 = arith.constant 0 : index
    %99 = vector.load %arg7[%c2, %c0_39, %c0_40] : memref<4x8x32xbf16, #tpu.memory_space<vmem>>, vector<1x8x32xbf16>
    %100 = vector.shape_cast %99 : vector<1x8x32xbf16> to vector<8x32xbf16>
    %cst_41 = arith.constant dense<0.000000e+00> : vector<8x32xf32>
    %101 = tpu.matmul %98, %100, %cst_41 {dimension_numbers = #tpu.dot_dimension_numbers<[1], [0], [0], [1], [0, 0, 1, 1], [], []>} : vector<8x8xbf16>, vector<8x32xbf16>, vector<8x32xf32> -> vector<8x32xf32>
    %102 = arith.addf %96, %101 : vector<8x32xf32>
    %103 = vector.extract_strided_slice %85 {offsets = [3, 0, 0], sizes = [1, 8, 8], strides = [1, 1, 1]} : vector<4x8x8xbf16> to vector<1x8x8xbf16>
    %104 = vector.shape_cast %103 : vector<1x8x8xbf16> to vector<8x8xbf16>
    %c3 = arith.constant 3 : index
    %c0_42 = arith.constant 0 : index
    %c0_43 = arith.constant 0 : index
    %105 = vector.load %arg7[%c3, %c0_42, %c0_43] : memref<4x8x32xbf16, #tpu.memory_space<vmem>>, vector<1x8x32xbf16>
    %106 = vector.shape_cast %105 : vector<1x8x32xbf16> to vector<8x32xbf16>
    %cst_44 = arith.constant dense<0.000000e+00> : vector<8x32xf32>
    %107 = tpu.matmul %104, %106, %cst_44 {dimension_numbers = #tpu.dot_dimension_numbers<[1], [0], [0], [1], [0, 0, 1, 1], [], []>} : vector<8x8xbf16>, vector<8x32xbf16>, vector<8x32xf32> -> vector<8x32xf32>
    %108 = arith.addf %102, %107 : vector<8x32xf32>
    %109 = arith.addf %1, %108 : vector<8x32xf32>
    %c0_45 = arith.constant 0 : index
    %c0_46 = arith.constant 0 : index
    %110 = vector.load %arg8[%c0_45, %c0_46] : memref<1x32xf32, #tpu.memory_space<vmem>>, vector<1x32xf32>
    %111 = vector.shape_cast %110 : vector<1x32xf32> to vector<32xf32>
    %c0_47 = arith.constant 0 : index
    %c0_48 = arith.constant 0 : index
    %112 = vector.load %arg9[%c0_47, %c0_48] : memref<1x32xf32, #tpu.memory_space<vmem>>, vector<1x32xf32>
    %113 = vector.shape_cast %112 : vector<1x32xf32> to vector<32xf32>
    %cst_49 = arith.constant dense<0.000000e+00> : vector<8xf32>
    %114 = vector.multi_reduction <add>, %109, %cst_49 [1] : vector<8x32xf32> to vector<8xf32>
    %115 = vector.shape_cast %114 : vector<8xf32> to vector<8x1xf32>
    %cst_50 = arith.constant 3.200000e+01 : f32
    %116 = vector.broadcast %cst_50 : f32 to vector<8x1xf32>
    %117 = arith.divf %115, %116 : vector<8x1xf32>
    %118 = vector.broadcast %117 : vector<8x1xf32> to vector<8x32xf32>
    %119 = arith.subf %109, %118 : vector<8x32xf32>
    %120 = arith.mulf %119, %119 : vector<8x32xf32>
    %cst_51 = arith.constant dense<0.000000e+00> : vector<8xf32>
    %121 = vector.multi_reduction <add>, %120, %cst_51 [1] : vector<8x32xf32> to vector<8xf32>
    %122 = vector.shape_cast %121 : vector<8xf32> to vector<8x1xf32>
    %cst_52 = arith.constant 3.200000e+01 : f32
    %123 = vector.broadcast %cst_52 : f32 to vector<8x1xf32>
    %124 = arith.divf %122, %123 : vector<8x1xf32>
    %125 = vector.broadcast %117 : vector<8x1xf32> to vector<8x32xf32>
    %126 = arith.subf %109, %125 : vector<8x32xf32>
    %cst_53 = arith.constant 9.99999974E-6 : f32
    %127 = vector.broadcast %cst_53 : f32 to vector<8x1xf32>
    %128 = arith.addf %124, %127 : vector<8x1xf32>
    %129 = math.rsqrt %128 : vector<8x1xf32>
    %130 = vector.broadcast %129 : vector<8x1xf32> to vector<8x32xf32>
    %131 = arith.mulf %126, %130 : vector<8x32xf32>
    %132 = vector.shape_cast %111 : vector<32xf32> to vector<1x32xf32>
    %133 = vector.broadcast %132 : vector<1x32xf32> to vector<8x32xf32>
    %134 = arith.mulf %131, %133 : vector<8x32xf32>
    %135 = vector.shape_cast %113 : vector<32xf32> to vector<1x32xf32>
    %136 = vector.broadcast %135 : vector<1x32xf32> to vector<8x32xf32>
    %137 = arith.addf %134, %136 : vector<8x32xf32>
    %138 = arith.truncf %137 : vector<8x32xf32> to vector<8x32xbf16>
    %c0_54 = arith.constant 0 : index
    %c0_55 = arith.constant 0 : index
    %139 = vector.load %arg10[%c0_54, %c0_55] : memref<32x128xbf16, #tpu.memory_space<vmem>>, vector<32x128xbf16>
    %cst_56 = arith.constant dense<0.000000e+00> : vector<8x128xf32>
    %140 = tpu.matmul %138, %139, %cst_56 {dimension_numbers = #tpu.dot_dimension_numbers<[1], [0], [0], [1], [0, 0, 1, 1], [], []>} : vector<8x32xbf16>, vector<32x128xbf16>, vector<8x128xf32> -> vector<8x128xf32>
    %c0_57 = arith.constant 0 : index
    %c0_58 = arith.constant 0 : index
    %141 = vector.load %arg11[%c0_57, %c0_58] : memref<1x128xf32, #tpu.memory_space<vmem>>, vector<1x128xf32>
    %142 = vector.shape_cast %141 : vector<1x128xf32> to vector<128xf32>
    %143 = vector.shape_cast %142 : vector<128xf32> to vector<1x128xf32>
    %144 = vector.broadcast %143 : vector<1x128xf32> to vector<8x128xf32>
    %145 = arith.addf %140, %144 : vector<8x128xf32>
    %cst_59 = arith.constant 0.000000e+00 : f32
    %146 = vector.broadcast %cst_59 : f32 to vector<8x128xf32>
    %147 = arith.maximumf %145, %146 : vector<8x128xf32>
    %148 = arith.truncf %147 : vector<8x128xf32> to vector<8x128xbf16>
    %c0_60 = arith.constant 0 : index
    %c0_61 = arith.constant 0 : index
    %149 = vector.load %arg12[%c0_60, %c0_61] : memref<128x32xbf16, #tpu.memory_space<vmem>>, vector<128x32xbf16>
    %cst_62 = arith.constant dense<0.000000e+00> : vector<8x32xf32>
    %150 = tpu.matmul %148, %149, %cst_62 {dimension_numbers = #tpu.dot_dimension_numbers<[1], [0], [0], [1], [0, 0, 1, 1], [], []>} : vector<8x128xbf16>, vector<128x32xbf16>, vector<8x32xf32> -> vector<8x32xf32>
    %c0_63 = arith.constant 0 : index
    %c0_64 = arith.constant 0 : index
    %151 = vector.load %arg13[%c0_63, %c0_64] : memref<1x32xf32, #tpu.memory_space<vmem>>, vector<1x32xf32>
    %152 = vector.shape_cast %151 : vector<1x32xf32> to vector<32xf32>
    %153 = vector.shape_cast %152 : vector<32xf32> to vector<1x32xf32>
    %154 = vector.broadcast %153 : vector<1x32xf32> to vector<8x32xf32>
    %155 = arith.addf %150, %154 : vector<8x32xf32>
    %156 = arith.addf %109, %155 : vector<8x32xf32>
    %c0_65 = arith.constant 0 : index
    %c0_66 = arith.constant 0 : index
    %c0_67 = arith.constant 0 : index
    %157 = vector.load %arg14[%c0_65, %c0_66, %c0_67] : memref<1x8x32xf32, #tpu.memory_space<vmem>>, vector<1x8x32xf32>
    %158 = vector.shape_cast %157 : vector<1x8x32xf32> to vector<8x32xf32>
    %159 = vector.shape_cast %156 : vector<8x32xf32> to vector<1x8x32xf32>
    tpu.vector_store %arg14[%c0_65, %c0_66, %c0_67], %159 {strides = array<i32>} : memref<1x8x32xf32, #tpu.memory_space<vmem>>, vector<1x8x32xf32>,
    return
  }
  func.func @transform_0(%arg0: i32, %arg1: i32) -> (i32, i32, i32) {
    %c0_i32 = arith.constant 0 : i32
    %c0_i32_0 = arith.constant 0 : i32
    return %arg0, %arg1, %c0_i32 : i32, i32, i32
  }
  func.func @transform_1(%arg0: i32, %arg1: i32) -> (i32, i32) {
    %c0_i32 = arith.constant 0 : i32
    %c0_i32_0 = arith.constant 0 : i32
    %c0_i32_1 = arith.constant 0 : i32
    return %c0_i32, %c0_i32_0 : i32, i32
  }
  func.func @transform_2(%arg0: i32, %arg1: i32) -> (i32, i32) {
    %c0_i32 = arith.constant 0 : i32
    %c0_i32_0 = arith.constant 0 : i32
    %c0_i32_1 = arith.constant 0 : i32
    return %c0_i32, %c0_i32_0 : i32, i32
  }
  func.func @transform_3(%arg0: i32, %arg1: i32) -> (i32, i32, i32) {
    %c0_i32 = arith.constant 0 : i32
    %c0_i32_0 = arith.constant 0 : i32
    %c0_i32_1 = arith.constant 0 : i32
    %c0_i32_2 = arith.constant 0 : i32
    return %c0_i32, %c0_i32_0, %c0_i32_1 : i32, i32, i32
  }
  func.func @transform_4(%arg0: i32, %arg1: i32) -> (i32, i32, i32) {
    %c0_i32 = arith.constant 0 : i32
    %c0_i32_0 = arith.constant 0 : i32
    %c0_i32_1 = arith.constant 0 : i32
    %c0_i32_2 = arith.constant 0 : i32
    return %c0_i32, %c0_i32_0, %c0_i32_1 : i32, i32, i32
  }
  func.func @transform_5(%arg0: i32, %arg1: i32) -> (i32, i32, i32) {
    %c0_i32 = arith.constant 0 : i32
    %c0_i32_0 = arith.constant 0 : i32
    %c0_i32_1 = arith.constant 0 : i32
    %c0_i32_2 = arith.constant 0 : i32
    return %c0_i32, %c0_i32_0, %c0_i32_1 : i32, i32, i32
  }
  func.func @transform_6(%arg0: i32, %arg1: i32) -> (i32, i32) {
    %c0_i32 = arith.constant 0 : i32
    %c0_i32_0 = arith.constant 0 : i32
    %c0_i32_1 = arith.constant 0 : i32
    return %c0_i32, %c0_i32_0 : i32, i32
  }
  func.func @transform_7(%arg0: i32, %arg1: i32) -> (i32, i32) {
    %c0_i32 = arith.constant 0 : i32
    %c0_i32_0 = arith.constant 0 : i32
    %c0_i32_1 = arith.constant 0 : i32
    return %c0_i32, %c0_i32_0 : i32, i32
  }
  func.func @transform_8(%arg0: i32, %arg1: i32) -> (i32, i32) {
    %c0_i32 = arith.constant 0 : i32
    %c0_i32_0 = arith.constant 0 : i32
    %c0_i32_1 = arith.constant 0 : i32
    return %c0_i32, %c0_i32_0 : i32, i32
  }
  func.func @transform_9(%arg0: i32, %arg1: i32) -> (i32, i32) {
    %c0_i32 = arith.constant 0 : i32
    %c0_i32_0 = arith.constant 0 : i32
    %c0_i32_1 = arith.constant 0 : i32
    return %c0_i32, %c0_i32_0 : i32, i32
  }
  func.func @transform_10(%arg0: i32, %arg1: i32) -> (i32, i32) {
    %c0_i32 = arith.constant 0 : i32
    %c0_i32_0 = arith.constant 0 : i32
    %c0_i32_1 = arith.constant 0 : i32
    return %c0_i32, %c0_i32_0 : i32, i32
  }
  func.func @transform_11(%arg0: i32, %arg1: i32) -> (i32, i32) {
    %c0_i32 = arith.constant 0 : i32
    %c0_i32_0 = arith.constant 0 : i32
    %c0_i32_1 = arith.constant 0 : i32
    return %c0_i32, %c0_i32_0 : i32, i32
  }
  func.func @transform_12(%arg0: i32, %arg1: i32) -> (i32, i32, i32) {
    %c0_i32 = arith.constant 0 : i32
    %c0_i32_0 = arith.constant 0 : i32
    return %arg0, %arg1, %c0_i32 : i32, i32, i32
  }
}

</mosaic_0001>

<llo_original>
// kernel: tpu_custom_call.1
$region0: #{tpu_custom_call.1}
  #allocation0 [shape = 'u32[]', space=smem, size = 0x4, offset = 0x4, fixed_abs, tag = 'smem constant byte address 0x4 - core index']
  #allocation1 [shape = 'u32[144,128]{1,0:T(1,128)}', space=vmem, size = 0x12000, scoped, tag = 'internal scratch']
  #allocation2 [shape = 'bf16[1,4,8,8]{3,2,1,0:T(8,128)(2,1)}', space=vmem, size = 0x2000, scoped, tag = 'scratch operand']
  #allocation3 [shape = 'bf16[1,4,8,8]{3,2,1,0:T(8,128)(2,1)}', space=vmem, size = 0x2000, scoped, tag = 'scratch operand']
  %s0 = inlined_call_operand.vmem [shape: f32[2,8,32], index: 0, kind: input, shape index: {}]
  %s1 = inlined_call_operand.vmem [shape: f32[1,32], index: 1, kind: input, shape index: {}]
  %s2 = inlined_call_operand.vmem [shape: f32[1,32], index: 2, kind: input, shape index: {}]
  %s3 = inlined_call_operand.vmem [shape: bf16[4,32,16], index: 3, kind: input, shape index: {}]
  %s4 = inlined_call_operand.vmem [shape: bf16[4,8,32], index: 4, kind: input, shape index: {}]
  %s5 = inlined_call_operand.vmem [shape: bf16[4,8,32], index: 5, kind: input, shape index: {}]
  %s6 = inlined_call_operand.vmem [shape: f32[1,32], index: 6, kind: input, shape index: {}]
  %s7 = inlined_call_operand.vmem [shape: f32[1,32], index: 7, kind: input, shape index: {}]
  %s8 = inlined_call_operand.vmem [shape: bf16[32,128], index: 8, kind: input, shape index: {}]
  %s9 = inlined_call_operand.vmem [shape: f32[1,128], index: 9, kind: input, shape index: {}]
  %s10 = inlined_call_operand.vmem [shape: bf16[128,32], index: 10, kind: input, shape index: {}]
  %s11 = inlined_call_operand.vmem [shape: f32[1,32], index: 11, kind: input, shape index: {}]
  %s12 = inlined_call_operand.hbm [shape: f32[2,8,32], index: 12, kind: output, shape index: {}]
  %s13 = sld [smem:[#allocation0]]
  $region88: #{tpu_custom_call.1} parent=0
    _
  %s15 = ssub.s32 1, %s13
  %s16 = scalar_select 0, %s15, %s13
  $region1: #{tpu_custom_call.1} parent=0
    #allocation4 [shape = 'u8[8192]{0}', space=vmem, size = 0x2000, scoped, tag = 'output window, operand 0']
    #allocation5 [shape = 's32[2]{0}', space=sflag, size = 0x8, scoped, tag = 'scoped memory for tpu_custom_call.1']
    %17 = vsyncpa [#allocation5], 0
    %s18 = scalar_lea.sflag [#allocation5], 1
    %19 = vsyncpa %s18, 0
    loop: start=0, step=1, limit=4
    $region2: #{tpu_custom_call.1} parent=1 // loop_pre_header
      _
    $region3: #{tpu_custom_call.1} parent=1 // loop_header
      %s21 = sphi 0, %s25
      %p22 = scmp.ge.s32.totalorder %s21, 4
      %s28 = sphi 0, %s40
      %s29 = sphi 0, %s36
      %s30 = sphi 0, %s28
      %s31 = sphi 0, %s29
      %s32 = sphi 0, %s30
      %s33 = sphi 0, %s31
      %s45 = sphi 0, %s47
      %s48 = sphi 0, %s45
      %s49 = sphi 0, %s48
      %s65 = sphi 0, %s49
      %s69 = sphi 0, %s69
      %s71 = sphi 0, %s69
      %s72 = sphi 0, %s71
      %s86 = sphi 0, %s72
      %s90 = sphi 0, %s90
      %s92 = sphi 0, %s90
      %s93 = sphi 0, %s92
      %s107 = sphi 0, %s93
      %s111 = sphi 0, %s111
      %s113 = sphi 0, %s111
      %s114 = sphi 0, %s113
      %s128 = sphi 0, %s114
      %s132 = sphi 0, %s132
      %s134 = sphi 0, %s132
      %s135 = sphi 0, %s134
      %s149 = sphi 0, %s135
      %s153 = sphi 0, %s153
      %s155 = sphi 0, %s153
      %s156 = sphi 0, %s155
      %s170 = sphi 0, %s156
      %s174 = sphi 0, %s174
      %s176 = sphi 0, %s174
      %s177 = sphi 0, %s176
      %s191 = sphi 0, %s177
      %s195 = sphi 0, %s195
      %s197 = sphi 0, %s195
      %s198 = sphi 0, %s197
      %s212 = sphi 0, %s198
      %s216 = sphi 0, %s216
      %s218 = sphi 0, %s216
      %s219 = sphi 0, %s218
      %s233 = sphi 0, %s219
      %s237 = sphi 0, %s237
      %s239 = sphi 0, %s237
      %s240 = sphi 0, %s239
      %s254 = sphi 0, %s240
      %s258 = sphi 0, %s258
      %s260 = sphi 0, %s258
      %s261 = sphi 0, %s260
      %s275 = sphi 0, %s261
      %s279 = sphi 0, %s279
      %s281 = sphi 0, %s279
      %s282 = sphi 0, %s281
      %s296 = sphi 0, %s282
      %s304 = sphi 0, %s306
      %s307 = sphi 0, %s304
      %s308 = sphi 0, %s307
      %s324 = sphi 0, %s308
    $region4: #{tpu_custom_call.1} parent=1 // loop_header_branch
      %24 = sbr.rel (%p22) target = $region8
    $region5: #{tpu_custom_call.1} parent=1 // loop_body
      %s26 = ssub.s32 %s21, 1
      %s27 = ssub.s32 %s21, 2
      %s34 = sadd.s32 1, %s29
      %p35 = scmp.ge.s32.totalorder %s34, 1
      %s36 = scalar_select %p35, 0, %s34
      %s37 = sadd.s32 1, %s28
      %s38 = scalar_select %p35, %s37, %s28
      %p39 = scmp.ge.s32.totalorder %s38, 2
      %s40 = scalar_select %p39, 0, %s38
      %s41 = ssub.s32 %s28, %s40
      %s42 = ssub.s32 %s29, %s36
      %s43 = sor.u32 %s41, %s42
      %p44 = scmp.eq.s32.totalorder %s43, 0
      %s46 = sadd.s32 %s45, 1
      %s47 = scalar_select %p44, %s45, %s46
      %p50 = pneg %p44
      %p51 = scmp.eq.s32.totalorder %s21, 1
      %p52 = por %p50, %p51
      %p53 = scmp.ne.s32.totalorder %s45, %s48
      %p54 = scmp.eq.s32.totalorder %s21, 0
      %p55 = por %p53, %p54
      %p56 = scmp.ne.s32.totalorder %s45, %s48
      %p57 = scmp.eq.s32.totalorder %s26, 1
      %p58 = por %p56, %p57
      %p59 = scmp.ne.s32.totalorder %s48, %s49
      %p60 = scmp.eq.s32.totalorder %s26, 0
      %p61 = por %p59, %p60
      %p62 = scmp.ne.s32.totalorder %s48, %s49
      %p63 = scmp.eq.s32.totalorder %s27, 1
      %p64 = por %p62, %p63
      %p66 = scmp.ne.s32.totalorder %s49, %s65
      %p67 = scmp.eq.s32.totalorder %s27, 0
      %p68 = por %p66, %p67
      %s70 = sadd.s32 %s69, 1
      %p73 = scmp.eq.s32.totalorder %s21, 1
      %p74 = scmp.ne.s32.totalorder %s69, %s71
      %p75 = scmp.eq.s32.totalorder %s21, 0
      %p76 = por %p74, %p75
      %p77 = scmp.ne.s32.totalorder %s69, %s71
      %p78 = scmp.eq.s32.totalorder %s26, 1
      %p79 = por %p77, %p78
      %p80 = scmp.ne.s32.totalorder %s71, %s72
      %p81 = scmp.eq.s32.totalorder %s26, 0
      %p82 = por %p80, %p81
      %p83 = scmp.ne.s32.totalorder %s71, %s72
      %p84 = scmp.eq.s32.totalorder %s27, 1
      %p85 = por %p83, %p84
      %p87 = scmp.ne.s32.totalorder %s72, %s86
      %p88 = scmp.eq.s32.totalorder %s27, 0
      %p89 = por %p87, %p88
      %s91 = sadd.s32 %s90, 1
      %p94 = scmp.eq.s32.totalorder %s21, 1
      %p95 = scmp.ne.s32.totalorder %s90, %s92
      %p96 = scmp.eq.s32.totalorder %s21, 0
      %p97 = por %p95, %p96
      %p98 = scmp.ne.s32.totalorder %s90, %s92
      %p99 = scmp.eq.s32.totalorder %s26, 1
      %p100 = por %p98, %p99
      %p101 = scmp.ne.s32.totalorder %s92, %s93
      %p102 = scmp.eq.s32.totalorder %s26, 0
      %p103 = por %p101, %p102
      %p104 = scmp.ne.s32.totalorder %s92, %s93
      %p105 = scmp.eq.s32.totalorder %s27, 1
      %p106 = por %p104, %p105
      %p108 = scmp.ne.s32.totalorder %s93, %s107
      %p109 = scmp.eq.s32.totalorder %s27, 0
      %p110 = por %p108, %p109
      %s112 = sadd.s32 %s111, 1
      %p115 = scmp.eq.s32.totalorder %s21, 1
      %p116 = scmp.ne.s32.totalorder %s111, %s113
      %p117 = scmp.eq.s32.totalorder %s21, 0
      %p118 = por %p116, %p117
      %p119 = scmp.ne.s32.totalorder %s111, %s113
      %p120 = scmp.eq.s32.totalorder %s26, 1
      %p121 = por %p119, %p120
      %p122 = scmp.ne.s32.totalorder %s113, %s114
      %p123 = scmp.eq.s32.totalorder %s26, 0
      %p124 = por %p122, %p123
      %p125 = scmp.ne.s32.totalorder %s113, %s114
      %p126 = scmp.eq.s32.totalorder %s27, 1
      %p127 = por %p125, %p126
      %p129 = scmp.ne.s32.totalorder %s114, %s128
      %p130 = scmp.eq.s32.totalorder %s27, 0
      %p131 = por %p129, %p130
      %s133 = sadd.s32 %s132, 1
      %p136 = scmp.eq.s32.totalorder %s21, 1
      %p137 = scmp.ne.s32.totalorder %s132, %s134
      %p138 = scmp.eq.s32.totalorder %s21, 0
      %p139 = por %p137, %p138
      %p140 = scmp.ne.s32.totalorder %s132, %s134
      %p141 = scmp.eq.s32.totalorder %s26, 1
      %p142 = por %p140, %p141
      %p143 = scmp.ne.s32.totalorder %s134, %s135
      %p144 = scmp.eq.s32.totalorder %s26, 0
      %p145 = por %p143, %p144
      %p146 = scmp.ne.s32.totalorder %s134, %s135
      %p147 = scmp.eq.s32.totalorder %s27, 1
      %p148 = por %p146, %p147
      %p150 = scmp.ne.s32.totalorder %s135, %s149
      %p151 = scmp.eq.s32.totalorder %s27, 0
      %p152 = por %p150, %p151
      %s154 = sadd.s32 %s153, 1
      %p157 = scmp.eq.s32.totalorder %s21, 1
      %p158 = scmp.ne.s32.totalorder %s153, %s155
      %p159 = scmp.eq.s32.totalorder %s21, 0
      %p160 = por %p158, %p159
      %p161 = scmp.ne.s32.totalorder %s153, %s155
      %p162 = scmp.eq.s32.totalorder %s26, 1
      %p163 = por %p161, %p162
      %p164 = scmp.ne.s32.totalorder %s155, %s156
      %p165 = scmp.eq.s32.totalorder %s26, 0
      %p166 = por %p164, %p165
      %p167 = scmp.ne.s32.totalorder %s155, %s156
      %p168 = scmp.eq.s32.totalorder %s27, 1
      %p169 = por %p167, %p168
      %p171 = scmp.ne.s32.totalorder %s156, %s170
      %p172 = scmp.eq.s32.totalorder %s27, 0
      %p173 = por %p171, %p172
      %s175 = sadd.s32 %s174, 1
      %p178 = scmp.eq.s32.totalorder %s21, 1
      %p179 = scmp.ne.s32.totalorder %s174, %s176
      %p180 = scmp.eq.s32.totalorder %s21, 0
      %p181 = por %p179, %p180
      %p182 = scmp.ne.s32.totalorder %s174, %s176
      %p183 = scmp.eq.s32.totalorder %s26, 1
      %p184 = por %p182, %p183
      %p185 = scmp.ne.s32.totalorder %s176, %s177
      %p186 = scmp.eq.s32.totalorder %s26, 0
      %p187 = por %p185, %p186
      %p188 = scmp.ne.s32.totalorder %s176, %s177
      %p189 = scmp.eq.s32.totalorder %s27, 1
      %p190 = por %p188, %p189
      %p192 = scmp.ne.s32.totalorder %s177, %s191
      %p193 = scmp.eq.s32.totalorder %s27, 0
      %p194 = por %p192, %p193
      %s196 = sadd.s32 %s195, 1
      %p199 = scmp.eq.s32.totalorder %s21, 1
      %p200 = scmp.ne.s32.totalorder %s195, %s197
      %p201 = scmp.eq.s32.totalorder %s21, 0
      %p202 = por %p200, %p201
      %p203 = scmp.ne.s32.totalorder %s195, %s197
      %p204 = scmp.eq.s32.totalorder %s26, 1
      %p205 = por %p203, %p204
      %p206 = scmp.ne.s32.totalorder %s197, %s198
      %p207 = scmp.eq.s32.totalorder %s26, 0
      %p208 = por %p206, %p207
      %p209 = scmp.ne.s32.totalorder %s197, %s198
      %p210 = scmp.eq.s32.totalorder %s27, 1
      %p211 = por %p209, %p210
      %p213 = scmp.ne.s32.totalorder %s198, %s212
      %p214 = scmp.eq.s32.totalorder %s27, 0
      %p215 = por %p213, %p214
      %s217 = sadd.s32 %s216, 1
      %p220 = scmp.eq.s32.totalorder %s21, 1
      %p221 = scmp.ne.s32.totalorder %s216, %s218
      %p222 = scmp.eq.s32.totalorder %s21, 0
      %p223 = por %p221, %p222
      %p224 = scmp.ne.s32.totalorder %s216, %s218
      %p225 = scmp.eq.s32.totalorder %s26, 1
      %p226 = por %p224, %p225
      %p227 = scmp.ne.s32.totalorder %s218, %s219
      %p228 = scmp.eq.s32.totalorder %s26, 0
      %p229 = por %p227, %p228
      %p230 = scmp.ne.s32.totalorder %s218, %s219
      %p231 = scmp.eq.s32.totalorder %s27, 1
      %p232 = por %p230, %p231
      %p234 = scmp.ne.s32.totalorder %s219, %s233
      %p235 = scmp.eq.s32.totalorder %s27, 0
      %p236 = por %p234, %p235
      %s238 = sadd.s32 %s237, 1
      %p241 = scmp.eq.s32.totalorder %s21, 1
      %p242 = scmp.ne.s32.totalorder %s237, %s239
      %p243 = scmp.eq.s32.totalorder %s21, 0
      %p244 = por %p242, %p243
      %p245 = scmp.ne.s32.totalorder %s237, %s239
      %p246 = scmp.eq.s32.totalorder %s26, 1
      %p247 = por %p245, %p246
      %p248 = scmp.ne.s32.totalorder %s239, %s240
      %p249 = scmp.eq.s32.totalorder %s26, 0
      %p250 = por %p248, %p249
      %p251 = scmp.ne.s32.totalorder %s239, %s240
      %p252 = scmp.eq.s32.totalorder %s27, 1
      %p253 = por %p251, %p252
      %p255 = scmp.ne.s32.totalorder %s240, %s254
      %p256 = scmp.eq.s32.totalorder %s27, 0
      %p257 = por %p255, %p256
      %s259 = sadd.s32 %s258, 1
      %p262 = scmp.eq.s32.totalorder %s21, 1
      %p263 = scmp.ne.s32.totalorder %s258, %s260
      %p264 = scmp.eq.s32.totalorder %s21, 0
      %p265 = por %p263, %p264
      %p266 = scmp.ne.s32.totalorder %s258, %s260
      %p267 = scmp.eq.s32.totalorder %s26, 1
      %p268 = por %p266, %p267
      %p269 = scmp.ne.s32.totalorder %s260, %s261
      %p270 = scmp.eq.s32.totalorder %s26, 0
      %p271 = por %p269, %p270
      %p272 = scmp.ne.s32.totalorder %s260, %s261
      %p273 = scmp.eq.s32.totalorder %s27, 1
      %p274 = por %p272, %p273
      %p276 = scmp.ne.s32.totalorder %s261, %s275
      %p277 = scmp.eq.s32.totalorder %s27, 0
      %p278 = por %p276, %p277
      %s280 = sadd.s32 %s279, 1
      %p283 = scmp.eq.s32.totalorder %s21, 1
      %p284 = scmp.ne.s32.totalorder %s279, %s281
      %p285 = scmp.eq.s32.totalorder %s21, 0
      %p286 = por %p284, %p285
      %p287 = scmp.ne.s32.totalorder %s279, %s281
      %p288 = scmp.eq.s32.totalorder %s26, 1
      %p289 = por %p287, %p288
      %p290 = scmp.ne.s32.totalorder %s281, %s282
      %p291 = scmp.eq.s32.totalorder %s26, 0
      %p292 = por %p290, %p291
      %p293 = scmp.ne.s32.totalorder %s281, %s282
      %p294 = scmp.eq.s32.totalorder %s27, 1
      %p295 = por %p293, %p294
      %p297 = scmp.ne.s32.totalorder %s282, %s296
      %p298 = scmp.eq.s32.totalorder %s27, 0
      %p299 = por %p297, %p298
      %s300 = ssub.s32 %s28, %s40
      %s301 = ssub.s32 %s29, %s36
      %s302 = sor.u32 %s300, %s301
      %p303 = scmp.eq.s32.totalorder %s302, 0
      %s305 = sadd.s32 %s304, 1
      %s306 = scalar_select %p303, %s304, %s305
      %p309 = pneg %p303
      %p310 = scmp.eq.s32.totalorder %s21, 1
      %p311 = por %p309, %p310
      %p312 = scmp.ne.s32.totalorder %s304, %s307
      %p313 = scmp.eq.s32.totalorder %s21, 0
      %p314 = por %p312, %p313
      %p315 = scmp.ne.s32.totalorder %s304, %s307
      %p316 = scmp.eq.s32.totalorder %s26, 1
      %p317 = por %p315, %p316
      %p318 = scmp.ne.s32.totalorder %s307, %s308
      %p319 = scmp.eq.s32.totalorder %s26, 0
      %p320 = por %p318, %p319
      %p321 = scmp.ne.s32.totalorder %s307, %s308
      %p322 = scmp.eq.s32.totalorder %s27, 1
      %p323 = por %p321, %p322
      %p325 = scmp.ne.s32.totalorder %s308, %s324
      %p326 = scmp.eq.s32.totalorder %s27, 0
      %p327 = por %p325, %p326
      %p328 = scmp.le.s32.totalorder 1, %s21
      %p329 = scmp.lt.s32.totalorder %s21, 3
      %p330 = pnand %p328, %p329
      %p331 = pneg %p330
      // Predicated region
      $region9: #{tpu_custom_call.1} parent=5 // pred_check
        _
      $region10: #{tpu_custom_call.1} parent=5 // pred_check_branch
        %333 = sbr.rel (%p330) target = $region12
      $region11: #{tpu_custom_call.1} parent=5 // pred_region
        %s334 = ssub.s32 %s21, 1
        // Predicated region
        $region13: #{tpu_custom_call.1} parent=11 // pred_check
          %p335 = pneg %p82
        $region14: #{tpu_custom_call.1} parent=11 // pred_check_branch
          %337 = sbr.rel (%p335) target = $region16
        $region15: #{tpu_custom_call.1} parent=11 // pred_region
          _
        $region16: #{tpu_custom_call.1} parent=11 // pred_fallthru
          _
        // Predicated region
        $region17: #{tpu_custom_call.1} parent=11 // pred_check
          %p338 = pneg %p103
        $region18: #{tpu_custom_call.1} parent=11 // pred_check_branch
          %340 = sbr.rel (%p338) target = $region20
        $region19: #{tpu_custom_call.1} parent=11 // pred_region
          _
        $region20: #{tpu_custom_call.1} parent=11 // pred_fallthru
          _
        // Predicated region
        $region21: #{tpu_custom_call.1} parent=11 // pred_check
          %p341 = pneg %p124
        $region22: #{tpu_custom_call.1} parent=11 // pred_check_branch
          %343 = sbr.rel (%p341) target = $region24
        $region23: #{tpu_custom_call.1} parent=11 // pred_region
          _
        $region24: #{tpu_custom_call.1} parent=11 // pred_fallthru
          _
        // Predicated region
        $region25: #{tpu_custom_call.1} parent=11 // pred_check
          %p344 = pneg %p145
        $region26: #{tpu_custom_call.1} parent=11 // pred_check_branch
          %346 = sbr.rel (%p344) target = $region28
        $region27: #{tpu_custom_call.1} parent=11 // pred_region
          _
        $region28: #{tpu_custom_call.1} parent=11 // pred_fallthru
          _
        // Predicated region
        $region29: #{tpu_custom_call.1} parent=11 // pred_check
          %p347 = pneg %p166
        $region30: #{tpu_custom_call.1} parent=11 // pred_check_branch
          %349 = sbr.rel (%p347) target = $region32
        $region31: #{tpu_custom_call.1} parent=11 // pred_region
          _
        $region32: #{tpu_custom_call.1} parent=11 // pred_fallthru
          _
        // Predicated region
        $region33: #{tpu_custom_call.1} parent=11 // pred_check
          %p350 = pneg %p187
        $region34: #{tpu_custom_call.1} parent=11 // pred_check_branch
          %352 = sbr.rel (%p350) target = $region36
        $region35: #{tpu_custom_call.1} parent=11 // pred_region
          _
        $region36: #{tpu_custom_call.1} parent=11 // pred_fallthru
          _
        // Predicated region
        $region37: #{tpu_custom_call.1} parent=11 // pred_check
          %p353 = pneg %p208
        $region38: #{tpu_custom_call.1} parent=11 // pred_check_branch
          %355 = sbr.rel (%p353) target = $region40
        $region39: #{tpu_custom_call.1} parent=11 // pred_region
          _
        $region40: #{tpu_custom_call.1} parent=11 // pred_fallthru
          _
        // Predicated region
        $region41: #{tpu_custom_call.1} parent=11 // pred_check
          %p356 = pneg %p229
        $region42: #{tpu_custom_call.1} parent=11 // pred_check_branch
          %358 = sbr.rel (%p356) target = $region44
        $region43: #{tpu_custom_call.1} parent=11 // pred_region
          _
        $region44: #{tpu_custom_call.1} parent=11 // pred_fallthru
          _
        // Predicated region
        $region45: #{tpu_custom_call.1} parent=11 // pred_check
          %p359 = pneg %p250
        $region46: #{tpu_custom_call.1} parent=11 // pred_check_branch
          %361 = sbr.rel (%p359) target = $region48
        $region47: #{tpu_custom_call.1} parent=11 // pred_region
          _
        $region48: #{tpu_custom_call.1} parent=11 // pred_fallthru
          _
        // Predicated region
        $region49: #{tpu_custom_call.1} parent=11 // pred_check
          %p362 = pneg %p271
        $region50: #{tpu_custom_call.1} parent=11 // pred_check_branch
          %364 = sbr.rel (%p362) target = $region52
        $region51: #{tpu_custom_call.1} parent=11 // pred_region
          _
        $region52: #{tpu_custom_call.1} parent=11 // pred_fallthru
          _
        // Predicated region
        $region53: #{tpu_custom_call.1} parent=11 // pred_check
          %p365 = pneg %p292
        $region54: #{tpu_custom_call.1} parent=11 // pred_check_branch
          %367 = sbr.rel (%p365) target = $region56
        $region55: #{tpu_custom_call.1} parent=11 // pred_region
          _
        $region56: #{tpu_custom_call.1} parent=11 // pred_fallthru
          _
      $region12: #{tpu_custom_call.1} parent=5 // pred_fallthru
        _
      %p368 = scmp.lt.s32.totalorder %s21, 2
      // Predicated region
      $region57: #{tpu_custom_call.1} parent=5 // pred_check
        %p369 = pneg %p368
      $region58: #{tpu_custom_call.1} parent=5 // pred_check_branch
        %371 = sbr.rel (%p369) target = $region60
      $region59: #{tpu_custom_call.1} parent=5 // pred_region
        // Predicated region
        $region61: #{tpu_custom_call.1} parent=59 // pred_check
          %p372 = pneg %p55
        $region62: #{tpu_custom_call.1} parent=59 // pred_check_branch
          %374 = sbr.rel (%p372) target = $region64
        $region63: #{tpu_custom_call.1} parent=59 // pred_region
          %p375 = scmp.lt.s32.totalorder %s28, 1
          %s376 = scalar_select %p375, %s28, 1
          %p377 = scmp.lt.s32.totalorder %s29, 0
          %s378 = scalar_select %p377, %s29, 0
          %s379 = sadd.s32 %s378, %s376
          %s380 = smul.addr %s379, 8
          %s381 = scalar_lea.vmem %s0, %s380
        $region64: #{tpu_custom_call.1} parent=59 // pred_fallthru
          _
      $region60: #{tpu_custom_call.1} parent=5 // pred_fallthru
        _
      %p382 = scmp.le.s32.totalorder 1, %s21
      %p383 = scmp.lt.s32.totalorder %s21, 3
      %p384 = pnand %p382, %p383
      %p385 = pneg %p384
      // Predicated region
      $region65: #{tpu_custom_call.1} parent=5 // pred_check
        _
      $region66: #{tpu_custom_call.1} parent=5 // pred_check_branch
        %387 = sbr.rel (%p384) target = $region68
      $region67: #{tpu_custom_call.1} parent=5 // pred_region
        %s388 = ssub.s32 %s21, 1
        %p389 = scmp.lt.s32.totalorder %s30, 1
        %s390 = scalar_select %p389, %s30, 1
        %p391 = scmp.lt.s32.totalorder %s31, 0
        %s392 = scalar_select %p391, %s31, 0
        %s393 = sadd.s32 %s392, %s390
        %s394 = smul.addr %s393, 8
        %s395 = scalar_lea.vmem %s0, %s394
        %p396 = pneg %p61
        %p397 = pneg %p58
        %p398 = pneg %p82
        %p399 = pneg %p79
        %p400 = pneg %p103
        %p401 = pneg %p100
        %p402 = pneg %p124
        %p403 = pneg %p121
        %p404 = pneg %p145
        %p405 = pneg %p142
        %p406 = pneg %p166
        %p407 = pneg %p163
        %p408 = pneg %p187
        %p409 = pneg %p184
        %p410 = pneg %p208
        %p411 = pneg %p205
        %p412 = pneg %p229
        %p413 = pneg %p226
        %p414 = pneg %p250
        %p415 = pneg %p247
        %p416 = pneg %p271
        %p417 = pneg %p268
        %p418 = pneg %p292
        %p419 = pneg %p289
        %p420 = pneg %p320
        %p421 = pneg %p317
        %s422 = sand.u32 %s307, 1
        %s423 = scalar_lea.sflag [#allocation5], %s422
        %s424 = sand.u32 %s307, 1
        %s425 = smul.addr %s424, 8
        %s426 = scalar_lea.vmem [#allocation4], %s425
        %p427 = scmp.lt.s32.totalorder %s30, 1
        %s428 = scalar_select %p427, %s30, 1
        %p429 = scmp.lt.s32.totalorder %s31, 0
        %s430 = scalar_select %p429, %s31, 0
        %s431 = sadd.s32 %s430, %s428
        %s432 = smul.addr %s431, 8
        %s433 = scalar_lea.vmem %s0, %s432
        %v435 = vld [vmem:[%s433] sm:$0xff]
        %v436 = vld [vmem:[%s1] sm:$0x1]
        %v437 = vld [vmem:[%s2] sm:$0x1]
        %vm438 = vcmask 261120
        %v439 = vsel %vm438, %v435, 0.0
        %440 = vadd.xlane.f32.xlu0 %v439
        %v441 = vpop.xlane.xlu0 %440
        %v442 = vrcp.pop 32.0
        %v443 = vmul.f32 %v441, %v442
        %v444 = vsub.f32 %v435, %v443
        %v445 = vmul.f32 %v444, %v444
        %v446 = vsel %vm438, %v445, 0.0
        %447 = vadd.xlane.f32.xlu0 %v446
        %v448 = vpop.xlane.xlu0 %447
        %v449 = vmul.f32 %v448, %v442
        %v450 = vadd.f32 %v449, 1e-05
        %v451 = vrsqrt.pop %v450
        %v452 = vmul.f32 %v444, %v451
        %v454 = vlaneseq
        %v455 = vshrl.u32 %v454, 7
        %v456 = vsub.s32 0, %v455
        %v457 = vrot.slane %v436, %v456
        %v459 = vmul.f32 %v452, %v457
        %v461 = vlaneseq
        %v462 = vshrl.u32 %v461, 7
        %v463 = vsub.s32 0, %v462
        %v464 = vrot.slane %v437, %v463
        %v466 = vadd.f32 %v459, %v464
        %v467 = vpack.c.bf16 %v466, %v466
        %v468 = vld [vmem:[%s3] sm:$0xf]
        %v469 = vld [vmem:[%s3 + $0x4] sm:$0xf]
        %v470 = vld [vmem:[%s3 + $0x8] sm:$0xf]
        %v471 = vld [vmem:[%s3 + $0xc] sm:$0xf]
        %v472 = vld [vmem:[%s3 + $0x10] sm:$0xf]
        %v473 = vld [vmem:[%s3 + $0x14] sm:$0xf]
        %v474 = vld [vmem:[%s3 + $0x18] sm:$0xf]
        %v475 = vld [vmem:[%s3 + $0x1c] sm:$0xf]
        %v476 = vld [vmem:[%s3 + $0x20] sm:$0xf]
        %v477 = vld [vmem:[%s3 + $0x24] sm:$0xf]
        %v478 = vld [vmem:[%s3 + $0x28] sm:$0xf]
        %v479 = vld [vmem:[%s3 + $0x2c] sm:$0xf]
        %v480 = vld [vmem:[%s3 + $0x30] sm:$0xf]
        %v481 = vld [vmem:[%s3 + $0x34] sm:$0xf]
        %v482 = vld [vmem:[%s3 + $0x38] sm:$0xf]
        %v483 = vld [vmem:[%s3 + $0x3c] sm:$0xf]
        %v488 = vunpack.c.l.b16 %v468
        %v489 = vunpack.c.l.b16 %v469
        %v490 = vunpack.c.l.b16 %v470
        %v491 = vunpack.c.l.b16 %v471
        %v492 = vpack.c.b16 %v489, %v488
        %v493 = vpack.c.b16 %v491, %v490
        %v497 = vsel %vm438, %v467, 0
        %499 = vmatprep.subr.bf16.mxu0 0
        %500 = vmatpush1.bf16.msra.mxu0 %v492
        %501 = vmatprep.subr.bf16.mxu0 0
        %502 = vmatpush1.bf16.msra.mxu0 %v493
        %503 = vmatprep.subr.bf16.mxu0 0
        %504 = vmatpush1.bf16.msra.mxu0 0
        %505 = vmatprep.subr.bf16.mxu0 0
        %506 = vmatpush1.bf16.msra.mxu0 0
        %507 = vmatprep.subr.bf16.mxu0 0
        %508 = vmatpush1.bf16.msra.mxu0 0
        %509 = vmatprep.subr.bf16.mxu0 0
        %510 = vmatpush1.bf16.msra.mxu0 0
        %511 = vmatprep.subr.bf16.mxu0 0
        %512 = vmatpush1.bf16.msra.mxu0 0
        %513 = vmatprep.subr.bf16.mxu0 0
        %514 = vmatpush1.bf16.msra.mxu0 0
        %515 = vmatprep.subr.bf16.mxu0 0
        %516 = vmatpush1.bf16.msra.mxu0 0
        %517 = vmatprep.subr.bf16.mxu0 0
        %518 = vmatpush1.bf16.msra.mxu0 0
        %519 = vmatprep.subr.bf16.mxu0 0
        %520 = vmatpush1.bf16.msra.mxu0 0
        %521 = vmatprep.subr.bf16.mxu0 0
        %522 = vmatpush1.bf16.msra.mxu0 0
        %523 = vmatprep.subr.bf16.mxu0 0
        %524 = vmatpush1.bf16.msra.mxu0 0
        %525 = vmatprep.subr.bf16.mxu0 0
        %526 = vmatpush1.bf16.msra.mxu0 0
        %527 = vmatprep.subr.bf16.mxu0 0
        %528 = vmatpush1.bf16.msra.mxu0 0
        %529 = vmatprep.subr.bf16.mxu0 0
        %530 = vmatpush1.bf16.msra.mxu0 0
        %531 = vmatprep.mubr.bf16.mxu0 0
        %532 = vmatmul.mubr.bf16.gmra.mrb[0].mxu0 %v497
        %v533 = vpop.f32.mrb[0].mxu0
        %v534 = vadd.f32 0.0, %v533
        %v535 = vpop.f32.mrb[0].mxu0
        %v536 = vpop.f32.mrb[0].mxu0
        %v537 = vpop.f32.mrb[0].mxu0
        %538 = vdwg.mxu0
        %v543 = vunpack.c.l.b16 %v472
        %v544 = vunpack.c.l.b16 %v473
        %v545 = vunpack.c.l.b16 %v474
        %v546 = vunpack.c.l.b16 %v475
        %v547 = vpack.c.b16 %v544, %v543
        %v548 = vpack.c.b16 %v546, %v545
        %551 = vmatprep.subr.bf16.mxu0 0
        %552 = vmatpush1.bf16.msra.mxu0 %v547
        %553 = vmatprep.subr.bf16.mxu0 0
        %554 = vmatpush1.bf16.msra.mxu0 %v548
        %555 = vmatprep.subr.bf16.mxu0 0
        %556 = vmatpush1.bf16.msra.mxu0 0
        %557 = vmatprep.subr.bf16.mxu0 0
        %558 = vmatpush1.bf16.msra.mxu0 0
        %559 = vmatprep.subr.bf16.mxu0 0
        %560 = vmatpush1.bf16.msra.mxu0 0
        %561 = vmatprep.subr.bf16.mxu0 0
        %562 = vmatpush1.bf16.msra.mxu0 0
        %563 = vmatprep.subr.bf16.mxu0 0
        %564 = vmatpush1.bf16.msra.mxu0 0
        %565 = vmatprep.subr.bf16.mxu0 0
        %566 = vmatpush1.bf16.msra.mxu0 0
        %567 = vmatprep.subr.bf16.mxu0 0
        %568 = vmatpush1.bf16.msra.mxu0 0
        %569 = vmatprep.subr.bf16.mxu0 0
        %570 = vmatpush1.bf16.msra.mxu0 0
        %571 = vmatprep.subr.bf16.mxu0 0
        %572 = vmatpush1.bf16.msra.mxu0 0
        %573 = vmatprep.subr.bf16.mxu0 0
        %574 = vmatpush1.bf16.msra.mxu0 0
        %575 = vmatprep.subr.bf16.mxu0 0
        %576 = vmatpush1.bf16.msra.mxu0 0
        %577 = vmatprep.subr.bf16.mxu0 0
        %578 = vmatpush1.bf16.msra.mxu0 0
        %579 = vmatprep.subr.bf16.mxu0 0
        %580 = vmatpush1.bf16.msra.mxu0 0
        %581 = vmatprep.subr.bf16.mxu0 0
        %582 = vmatpush1.bf16.msra.mxu0 0
        %583 = vmatprep.mubr.bf16.mxu0 0
        %584 = vmatmul.mubr.bf16.gmra.mrb[0].mxu0 %v497
        %v585 = vpop.f32.mrb[0].mxu0
        %v586 = vadd.f32 0.0, %v585
        %v587 = vpop.f32.mrb[0].mxu0
        %v588 = vpop.f32.mrb[0].mxu0
        %v589 = vpop.f32.mrb[0].mxu0
        %590 = vdwg.mxu0
        %v595 = vunpack.c.l.b16 %v476
        %v596 = vunpack.c.l.b16 %v477
        %v597 = vunpack.c.l.b16 %v478
        %v598 = vunpack.c.l.b16 %v479
        %v599 = vpack.c.b16 %v596, %v595
        %v600 = vpack.c.b16 %v598, %v597
        %603 = vmatprep.subr.bf16.mxu0 0
        %604 = vmatpush1.bf16.msra.mxu0 %v599
        %605 = vmatprep.subr.bf16.mxu0 0
        %606 = vmatpush1.bf16.msra.mxu0 %v600
        %607 = vmatprep.subr.bf16.mxu0 0
        %608 = vmatpush1.bf16.msra.mxu0 0
        %609 = vmatprep.subr.bf16.mxu0 0
        %610 = vmatpush1.bf16.msra.mxu0 0
        %611 = vmatprep.subr.bf16.mxu0 0
        %612 = vmatpush1.bf16.msra.mxu0 0
        %613 = vmatprep.subr.bf16.mxu0 0
        %614 = vmatpush1.bf16.msra.mxu0 0
        %615 = vmatprep.subr.bf16.mxu0 0
        %616 = vmatpush1.bf16.msra.mxu0 0
        %617 = vmatprep.subr.bf16.mxu0 0
        %618 = vmatpush1.bf16.msra.mxu0 0
        %619 = vmatprep.subr.bf16.mxu0 0
        %620 = vmatpush1.bf16.msra.mxu0 0
        %621 = vmatprep.subr.bf16.mxu0 0
        %622 = vmatpush1.bf16.msra.mxu0 0
        %623 = vmatprep.subr.bf16.mxu0 0
        %624 = vmatpush1.bf16.msra.mxu0 0
        %625 = vmatprep.subr.bf16.mxu0 0
        %626 = vmatpush1.bf16.msra.mxu0 0
        %627 = vmatprep.subr.bf16.mxu0 0
        %628 = vmatpush1.bf16.msra.mxu0 0
        %629 = vmatprep.subr.bf16.mxu0 0
        %630 = vmatpush1.bf16.msra.mxu0 0
        %631 = vmatprep.subr.bf16.mxu0 0
        %632 = vmatpush1.bf16.msra.mxu0 0
        %633 = vmatprep.subr.bf16.mxu0 0
        %634 = vmatpush1.bf16.msra.mxu0 0
        %635 = vmatprep.mubr.bf16.mxu0 0
        %636 = vmatmul.mubr.bf16.gmra.mrb[0].mxu0 %v497
        %v637 = vpop.f32.mrb[0].mxu0
        %v638 = vadd.f32 0.0, %v637
        %v639 = vpop.f32.mrb[0].mxu0
        %v640 = vpop.f32.mrb[0].mxu0
        %v641 = vpop.f32.mrb[0].mxu0
        %642 = vdwg.mxu0
        %v647 = vunpack.c.l.b16 %v480
        %v648 = vunpack.c.l.b16 %v481
        %v649 = vunpack.c.l.b16 %v482
        %v650 = vunpack.c.l.b16 %v483
        %v651 = vpack.c.b16 %v648, %v647
        %v652 = vpack.c.b16 %v650, %v649
        %655 = vmatprep.subr.bf16.mxu0 0
        %656 = vmatpush1.bf16.msra.mxu0 %v651
        %657 = vmatprep.subr.bf16.mxu0 0
        %658 = vmatpush1.bf16.msra.mxu0 %v652
        %659 = vmatprep.subr.bf16.mxu0 0
        %660 = vmatpush1.bf16.msra.mxu0 0
        %661 = vmatprep.subr.bf16.mxu0 0
        %662 = vmatpush1.bf16.msra.mxu0 0
        %663 = vmatprep.subr.bf16.mxu0 0
        %664 = vmatpush1.bf16.msra.mxu0 0
        %665 = vmatprep.subr.bf16.mxu0 0
        %666 = vmatpush1.bf16.msra.mxu0 0
        %667 = vmatprep.subr.bf16.mxu0 0
        %668 = vmatpush1.bf16.msra.mxu0 0
        %669 = vmatprep.subr.bf16.mxu0 0
        %670 = vmatpush1.bf16.msra.mxu0 0
        %671 = vmatprep.subr.bf16.mxu0 0
        %672 = vmatpush1.bf16.msra.mxu0 0
        %673 = vmatprep.subr.bf16.mxu0 0
        %674 = vmatpush1.bf16.msra.mxu0 0
        %675 = vmatprep.subr.bf16.mxu0 0
        %676 = vmatpush1.bf16.msra.mxu0 0
        %677 = vmatprep.subr.bf16.mxu0 0
        %678 = vmatpush1.bf16.msra.mxu0 0
        %679 = vmatprep.subr.bf16.mxu0 0
        %680 = vmatpush1.bf16.msra.mxu0 0
        %681 = vmatprep.subr.bf16.mxu0 0
        %682 = vmatpush1.bf16.msra.mxu0 0
        %683 = vmatprep.subr.bf16.mxu0 0
        %684 = vmatpush1.bf16.msra.mxu0 0
        %685 = vmatprep.subr.bf16.mxu0 0
        %686 = vmatpush1.bf16.msra.mxu0 0
        %687 = vmatprep.mubr.bf16.mxu0 0
        %688 = vmatmul.mubr.bf16.gmra.mrb[0].mxu0 %v497
        %v689 = vpop.f32.mrb[0].mxu0
        %v690 = vadd.f32 0.0, %v689
        %v691 = vpop.f32.mrb[0].mxu0
        %v692 = vpop.f32.mrb[0].mxu0
        %v693 = vpop.f32.mrb[0].mxu0
        %694 = vdwg.mxu0
        %v695 = vpack.c.bf16 %v534, %v534
        %v696 = vpack.c.bf16 %v586, %v586
        %v697 = vpack.c.bf16 %v638, %v638
        %v698 = vpack.c.bf16 %v690, %v690
        %v699 = vld [vmem:[%s4] sm:$0xf]
        %v700 = vld [vmem:[%s4 + $0x4] sm:$0xf]
        %v701 = vld [vmem:[%s4 + $0x8] sm:$0xf]
        %v702 = vld [vmem:[%s4 + $0xc] sm:$0xf]
        %v704 = vsel %vm438, %v699, 0
        %706 = vmatprep.subr.bf16.mxu0 0
        %707 = vmatpush1.bf16.xpose.msra.mxu0 %v497
        %708 = vmatprep.subr.bf16.mxu0 0
        %709 = vmatpush1.bf16.xpose.msra.mxu0 0
        %710 = vmatprep.subr.bf16.mxu0 0
        %711 = vmatpush1.bf16.xpose.msra.mxu0 0
        %712 = vmatprep.subr.bf16.mxu0 0
        %713 = vmatpush1.bf16.xpose.msra.mxu0 0
        %714 = vmatprep.subr.bf16.mxu0 0
        %715 = vmatpush1.bf16.xpose.msra.mxu0 0
        %716 = vmatprep.subr.bf16.mxu0 0
        %717 = vmatpush1.bf16.xpose.msra.mxu0 0
        %718 = vmatprep.subr.bf16.mxu0 0
        %719 = vmatpush1.bf16.xpose.msra.mxu0 0
        %720 = vmatprep.subr.bf16.mxu0 0
        %721 = vmatpush1.bf16.xpose.msra.mxu0 0
        %722 = vmatprep.subr.bf16.mxu0 0
        %723 = vmatpush1.bf16.xpose.msra.mxu0 0
        %724 = vmatprep.subr.bf16.mxu0 0
        %725 = vmatpush1.bf16.xpose.msra.mxu0 0
        %726 = vmatprep.subr.bf16.mxu0 0
        %727 = vmatpush1.bf16.xpose.msra.mxu0 0
        %728 = vmatprep.subr.bf16.mxu0 0
        %729 = vmatpush1.bf16.xpose.msra.mxu0 0
        %730 = vmatprep.subr.bf16.mxu0 0
        %731 = vmatpush1.bf16.xpose.msra.mxu0 0
        %732 = vmatprep.subr.bf16.mxu0 0
        %733 = vmatpush1.bf16.xpose.msra.mxu0 0
        %734 = vmatprep.subr.bf16.mxu0 0
        %735 = vmatpush1.bf16.xpose.msra.mxu0 0
        %736 = vmatprep.subr.bf16.mxu0 0
        %737 = vmatpush1.bf16.xpose.msra.mxu0 0
        %738 = vmatprep.mubr.bf16.mxu0 0
        %739 = vmatmul.mubr.bf16.gmra.mrb[0].mxu0 %v704
        %v740 = vpop.f32.mrb[0].mxu0
        %v741 = vadd.f32 0.0, %v740
        %v742 = vpop.f32.mrb[0].mxu0
        %v743 = vpop.f32.mrb[0].mxu0
        %v744 = vpop.f32.mrb[0].mxu0
        %745 = vdwg.mxu0
        %v747 = vsel %vm438, %v700, 0
        %749 = vmatprep.subr.bf16.mxu0 0
        %750 = vmatpush1.bf16.xpose.msra.mxu0 %v497
        %751 = vmatprep.subr.bf16.mxu0 0
        %752 = vmatpush1.bf16.xpose.msra.mxu0 0
        %753 = vmatprep.subr.bf16.mxu0 0
        %754 = vmatpush1.bf16.xpose.msra.mxu0 0
        %755 = vmatprep.subr.bf16.mxu0 0
        %756 = vmatpush1.bf16.xpose.msra.mxu0 0
        %757 = vmatprep.subr.bf16.mxu0 0
        %758 = vmatpush1.bf16.xpose.msra.mxu0 0
        %759 = vmatprep.subr.bf16.mxu0 0
        %760 = vmatpush1.bf16.xpose.msra.mxu0 0
        %761 = vmatprep.subr.bf16.mxu0 0
        %762 = vmatpush1.bf16.xpose.msra.mxu0 0
        %763 = vmatprep.subr.bf16.mxu0 0
        %764 = vmatpush1.bf16.xpose.msra.mxu0 0
        %765 = vmatprep.subr.bf16.mxu0 0
        %766 = vmatpush1.bf16.xpose.msra.mxu0 0
        %767 = vmatprep.subr.bf16.mxu0 0
        %768 = vmatpush1.bf16.xpose.msra.mxu0 0
        %769 = vmatprep.subr.bf16.mxu0 0
        %770 = vmatpush1.bf16.xpose.msra.mxu0 0
        %771 = vmatprep.subr.bf16.mxu0 0
        %772 = vmatpush1.bf16.xpose.msra.mxu0 0
        %773 = vmatprep.subr.bf16.mxu0 0
        %774 = vmatpush1.bf16.xpose.msra.mxu0 0
        %775 = vmatprep.subr.bf16.mxu0 0
        %776 = vmatpush1.bf16.xpose.msra.mxu0 0
        %777 = vmatprep.subr.bf16.mxu0 0
        %778 = vmatpush1.bf16.xpose.msra.mxu0 0
        %779 = vmatprep.subr.bf16.mxu0 0
        %780 = vmatpush1.bf16.xpose.msra.mxu0 0
        %781 = vmatprep.mubr.bf16.mxu0 0
        %782 = vmatmul.mubr.bf16.gmra.mrb[0].mxu0 %v747
        %v783 = vpop.f32.mrb[0].mxu0
        %v784 = vadd.f32 0.0, %v783
        %v785 = vpop.f32.mrb[0].mxu0
        %v786 = vpop.f32.mrb[0].mxu0
        %v787 = vpop.f32.mrb[0].mxu0
        %788 = vdwg.mxu0
        %v790 = vsel %vm438, %v701, 0
        %792 = vmatprep.subr.bf16.mxu0 0
        %793 = vmatpush1.bf16.xpose.msra.mxu0 %v497
        %794 = vmatprep.subr.bf16.mxu0 0
        %795 = vmatpush1.bf16.xpose.msra.mxu0 0
        %796 = vmatprep.subr.bf16.mxu0 0
        %797 = vmatpush1.bf16.xpose.msra.mxu0 0
        %798 = vmatprep.subr.bf16.mxu0 0
        %799 = vmatpush1.bf16.xpose.msra.mxu0 0
        %800 = vmatprep.subr.bf16.mxu0 0
        %801 = vmatpush1.bf16.xpose.msra.mxu0 0
        %802 = vmatprep.subr.bf16.mxu0 0
        %803 = vmatpush1.bf16.xpose.msra.mxu0 0
        %804 = vmatprep.subr.bf16.mxu0 0
        %805 = vmatpush1.bf16.xpose.msra.mxu0 0
        %806 = vmatprep.subr.bf16.mxu0 0
        %807 = vmatpush1.bf16.xpose.msra.mxu0 0
        %808 = vmatprep.subr.bf16.mxu0 0
        %809 = vmatpush1.bf16.xpose.msra.mxu0 0
        %810 = vmatprep.subr.bf16.mxu0 0
        %811 = vmatpush1.bf16.xpose.msra.mxu0 0
        %812 = vmatprep.subr.bf16.mxu0 0
        %813 = vmatpush1.bf16.xpose.msra.mxu0 0
        %814 = vmatprep.subr.bf16.mxu0 0
        %815 = vmatpush1.bf16.xpose.msra.mxu0 0
        %816 = vmatprep.subr.bf16.mxu0 0
        %817 = vmatpush1.bf16.xpose.msra.mxu0 0
        %818 = vmatprep.subr.bf16.mxu0 0
        %819 = vmatpush1.bf16.xpose.msra.mxu0 0
        %820 = vmatprep.subr.bf16.mxu0 0
        %821 = vmatpush1.bf16.xpose.msra.mxu0 0
        %822 = vmatprep.subr.bf16.mxu0 0
        %823 = vmatpush1.bf16.xpose.msra.mxu0 0
        %824 = vmatprep.mubr.bf16.mxu0 0
        %825 = vmatmul.mubr.bf16.gmra.mrb[0].mxu0 %v790
        %v826 = vpop.f32.mrb[0].mxu0
        %v827 = vadd.f32 0.0, %v826
        %v828 = vpop.f32.mrb[0].mxu0
        %v829 = vpop.f32.mrb[0].mxu0
        %v830 = vpop.f32.mrb[0].mxu0
        %831 = vdwg.mxu0
        %v833 = vsel %vm438, %v702, 0
        %835 = vmatprep.subr.bf16.mxu0 0
        %836 = vmatpush1.bf16.xpose.msra.mxu0 %v497
        %837 = vmatprep.subr.bf16.mxu0 0
        %838 = vmatpush1.bf16.xpose.msra.mxu0 0
        %839 = vmatprep.subr.bf16.mxu0 0
        %840 = vmatpush1.bf16.xpose.msra.mxu0 0
        %841 = vmatprep.subr.bf16.mxu0 0
        %842 = vmatpush1.bf16.xpose.msra.mxu0 0
        %843 = vmatprep.subr.bf16.mxu0 0
        %844 = vmatpush1.bf16.xpose.msra.mxu0 0
        %845 = vmatprep.subr.bf16.mxu0 0
        %846 = vmatpush1.bf16.xpose.msra.mxu0 0
        %847 = vmatprep.subr.bf16.mxu0 0
        %848 = vmatpush1.bf16.xpose.msra.mxu0 0
        %849 = vmatprep.subr.bf16.mxu0 0
        %850 = vmatpush1.bf16.xpose.msra.mxu0 0
        %851 = vmatprep.subr.bf16.mxu0 0
        %852 = vmatpush1.bf16.xpose.msra.mxu0 0
        %853 = vmatprep.subr.bf16.mxu0 0
        %854 = vmatpush1.bf16.xpose.msra.mxu0 0
        %855 = vmatprep.subr.bf16.mxu0 0
        %856 = vmatpush1.bf16.xpose.msra.mxu0 0
        %857 = vmatprep.subr.bf16.mxu0 0
        %858 = vmatpush1.bf16.xpose.msra.mxu0 0
        %859 = vmatprep.subr.bf16.mxu0 0
        %860 = vmatpush1.bf16.xpose.msra.mxu0 0
        %861 = vmatprep.subr.bf16.mxu0 0
        %862 = vmatpush1.bf16.xpose.msra.mxu0 0
        %863 = vmatprep.subr.bf16.mxu0 0
        %864 = vmatpush1.bf16.xpose.msra.mxu0 0
        %865 = vmatprep.subr.bf16.mxu0 0
        %866 = vmatpush1.bf16.xpose.msra.mxu0 0
        %867 = vmatprep.mubr.bf16.mxu0 0
        %868 = vmatmul.mubr.bf16.gmra.mrb[0].mxu0 %v833
        %v869 = vpop.f32.mrb[0].mxu0
        %v870 = vadd.f32 0.0, %v869
        %v871 = vpop.f32.mrb[0].mxu0
        %v872 = vpop.f32.mrb[0].mxu0
        %v873 = vpop.f32.mrb[0].mxu0
        %874 = vdwg.mxu0
        %v875 = vpack.c.bf16 %v741, %v741
        %v876 = vpack.c.bf16 %v784, %v784
        %v877 = vpack.c.bf16 %v827, %v827
        %v878 = vpack.c.bf16 %v870, %v870
        %s879 = smul.u32 %s31, 4
        %s880 = smul.addr %s879, 4
        %s881 = scalar_lea.vmem [#allocation2], %s880
        %vm882 = vcmask 60416
        %883 = vst.msk [vmem:[%s881] sm:$0xf] %vm882, %v875
        %884 = vst.msk [vmem:[%s881 + $0x4] sm:$0xf] %vm882, %v876
        %885 = vst.msk [vmem:[%s881 + $0x8] sm:$0xf] %vm882, %v877
        %886 = vst.msk [vmem:[%s881 + $0xc] sm:$0xf] %vm882, %v878
        %v891 = vunpack.c.l.b16 %v695
        %v892 = vunpack.c.l.b16 %v696
        %v893 = vunpack.c.l.b16 %v697
        %v894 = vunpack.c.l.b16 %v698
        %v895 = vpack.c.b16 %v891, %v891
        %v896 = vpack.c.b16 %v892, %v892
        %v897 = vpack.c.b16 %v893, %v893
        %v898 = vpack.c.b16 %v894, %v894
        %899 = vrot.lane.b32.xlu0 %v895, 120
        %v900 = vpop.permute.xlu0 %899
        %901 = vrot.lane.b32.xlu0 %v896, 120
        %v902 = vpop.permute.xlu0 %901
        %903 = vrot.lane.b32.xlu0 %v897, 120
        %v904 = vpop.permute.xlu0 %903
        %905 = vrot.lane.b32.xlu0 %v898, 120
        %v906 = vpop.permute.xlu0 %905
        %s911 = smul.addr %s879, 4
        %s912 = scalar_lea.vmem [#allocation3], %s911
        %913 = vst.msk [vmem:[%s912] sm:$0xf] %vm882, %v900
        %914 = vst.msk [vmem:[%s912 + $0x4] sm:$0xf] %vm882, %v902
        %915 = vst.msk [vmem:[%s912 + $0x8] sm:$0xf] %vm882, %v904
        %916 = vst.msk [vmem:[%s912 + $0xc] sm:$0xf] %vm882, %v906
        // While loop
        $region69: #{tpu_custom_call.1} parent=67 // loop_pre_header
          _
        $region70: #{tpu_custom_call.1} parent=67 // loop_header
          %s918 = sphi 0, %s920
          %p919 = scmp.ge.s32.totalorder %s918, %s31
          %v923 = vphi -inf, %v1146
          %v924 = vphi -inf, %v1147
          %v925 = vphi -inf, %v1148
          %v926 = vphi -inf, %v1149
          %v927 = vphi 0.0, %v1190
          %v928 = vphi 0.0, %v1191
          %v929 = vphi 0.0, %v1192
          %v930 = vphi 0.0, %v1193
          %v931 = vphi 0.0, %v1386
          %v932 = vphi 0.0, %v1387
          %v933 = vphi 0.0, %v1388
          %v934 = vphi 0.0, %v1389
        $region71: #{tpu_custom_call.1} parent=67 // loop_header_branch
          %922 = sbr.rel (%p919) target = $region75
        $region72: #{tpu_custom_call.1} parent=67 // loop_body
          %s935 = smul.u32 %s918, 4
          %s936 = smul.addr %s935, 4
          %s937 = scalar_lea.vmem [#allocation2], %s936
          %v938 = vld [vmem:[%s937] sm:$0xf]
          %v939 = vld [vmem:[%s937 + $0x4] sm:$0xf]
          %v940 = vld [vmem:[%s937 + $0x8] sm:$0xf]
          %v941 = vld [vmem:[%s937 + $0xc] sm:$0xf]
          %s942 = smul.addr %s935, 4
          %s943 = scalar_lea.vmem [#allocation3], %s942
          %v944 = vld [vmem:[%s943] sm:$0xf]
          %v945 = vld [vmem:[%s943 + $0x4] sm:$0xf]
          %v946 = vld [vmem:[%s943 + $0x8] sm:$0xf]
          %v947 = vld [vmem:[%s943 + $0xc] sm:$0xf]
          %vm948 = vcmask 64512
          %v950 = vsel %vm948, %v695, 0
          %vm952 = vcmask 1043456
          %v954 = vsel %vm952, %v938, 0
          %956 = vmatprep.subr.bf16.mxu0 0
          %957 = vmatpush1.bf16.msra.mxu0 %v954
          %958 = vmatprep.subr.bf16.mxu0 0
          %959 = vmatpush1.bf16.msra.mxu0 0
          %960 = vmatprep.subr.bf16.mxu0 0
          %961 = vmatpush1.bf16.msra.mxu0 0
          %962 = vmatprep.subr.bf16.mxu0 0
          %963 = vmatpush1.bf16.msra.mxu0 0
          %964 = vmatprep.subr.bf16.mxu0 0
          %965 = vmatpush1.bf16.msra.mxu0 0
          %966 = vmatprep.subr.bf16.mxu0 0
          %967 = vmatpush1.bf16.msra.mxu0 0
          %968 = vmatprep.subr.bf16.mxu0 0
          %969 = vmatpush1.bf16.msra.mxu0 0
          %970 = vmatprep.subr.bf16.mxu0 0
          %971 = vmatpush1.bf16.msra.mxu0 0
          %972 = vmatprep.subr.bf16.mxu0 0
          %973 = vmatpush1.bf16.msra.mxu0 0
          %974 = vmatprep.subr.bf16.mxu0 0
          %975 = vmatpush1.bf16.msra.mxu0 0
          %976 = vmatprep.subr.bf16.mxu0 0
          %977 = vmatpush1.bf16.msra.mxu0 0
          %978 = vmatprep.subr.bf16.mxu0 0
          %979 = vmatpush1.bf16.msra.mxu0 0
          %980 = vmatprep.subr.bf16.mxu0 0
          %981 = vmatpush1.bf16.msra.mxu0 0
          %982 = vmatprep.subr.bf16.mxu0 0
          %983 = vmatpush1.bf16.msra.mxu0 0
          %984 = vmatprep.subr.bf16.mxu0 0
          %985 = vmatpush1.bf16.msra.mxu0 0
          %986 = vmatprep.subr.bf16.mxu0 0
          %987 = vmatpush1.bf16.msra.mxu0 0
          %988 = vmatprep.mubr.bf16.mxu0 0
          %989 = vmatmul.mubr.bf16.gmra.mrb[0].mxu0 %v950
          %v990 = vpop.f32.mrb[0].mxu0
          %v991 = vadd.f32 0.0, %v990
          %v992 = vpop.f32.mrb[0].mxu0
          %v993 = vpop.f32.mrb[0].mxu0
          %v994 = vpop.f32.mrb[0].mxu0
          %995 = vdwg.mxu0
          %v997 = vsel %vm948, %v696, 0
          %v1000 = vsel %vm952, %v939, 0
          %1002 = vmatprep.subr.bf16.mxu0 0
          %1003 = vmatpush1.bf16.msra.mxu0 %v1000
          %1004 = vmatprep.subr.bf16.mxu0 0
          %1005 = vmatpush1.bf16.msra.mxu0 0
          %1006 = vmatprep.subr.bf16.mxu0 0
          %1007 = vmatpush1.bf16.msra.mxu0 0
          %1008 = vmatprep.subr.bf16.mxu0 0
          %1009 = vmatpush1.bf16.msra.mxu0 0
          %1010 = vmatprep.subr.bf16.mxu0 0
          %1011 = vmatpush1.bf16.msra.mxu0 0
          %1012 = vmatprep.subr.bf16.mxu0 0
          %1013 = vmatpush1.bf16.msra.mxu0 0
          %1014 = vmatprep.subr.bf16.mxu0 0
          %1015 = vmatpush1.bf16.msra.mxu0 0
          %1016 = vmatprep.subr.bf16.mxu0 0
          %1017 = vmatpush1.bf16.msra.mxu0 0
          %1018 = vmatprep.subr.bf16.mxu0 0
          %1019 = vmatpush1.bf16.msra.mxu0 0
          %1020 = vmatprep.subr.bf16.mxu0 0
          %1021 = vmatpush1.bf16.msra.mxu0 0
          %1022 = vmatprep.subr.bf16.mxu0 0
          %1023 = vmatpush1.bf16.msra.mxu0 0
          %1024 = vmatprep.subr.bf16.mxu0 0
          %1025 = vmatpush1.bf16.msra.mxu0 0
          %1026 = vmatprep.subr.bf16.mxu0 0
          %1027 = vmatpush1.bf16.msra.mxu0 0
          %1028 = vmatprep.subr.bf16.mxu0 0
          %1029 = vmatpush1.bf16.msra.mxu0 0
          %1030 = vmatprep.subr.bf16.mxu0 0
          %1031 = vmatpush1.bf16.msra.mxu0 0
          %1032 = vmatprep.subr.bf16.mxu0 0
          %1033 = vmatpush1.bf16.msra.mxu0 0
          %1034 = vmatprep.mubr.bf16.mxu0 0
          %1035 = vmatmul.mubr.bf16.gmra.mrb[0].mxu0 %v997
          %v1036 = vpop.f32.mrb[0].mxu0
          %v1037 = vadd.f32 0.0, %v1036
          %v1038 = vpop.f32.mrb[0].mxu0
          %v1039 = vpop.f32.mrb[0].mxu0
          %v1040 = vpop.f32.mrb[0].mxu0
          %1041 = vdwg.mxu0
          %v1043 = vsel %vm948, %v697, 0
          %v1046 = vsel %vm952, %v940, 0
          %1048 = vmatprep.subr.bf16.mxu0 0
          %1049 = vmatpush1.bf16.msra.mxu0 %v1046
          %1050 = vmatprep.subr.bf16.mxu0 0
          %1051 = vmatpush1.bf16.msra.mxu0 0
          %1052 = vmatprep.subr.bf16.mxu0 0
          %1053 = vmatpush1.bf16.msra.mxu0 0
          %1054 = vmatprep.subr.bf16.mxu0 0
          %1055 = vmatpush1.bf16.msra.mxu0 0
          %1056 = vmatprep.subr.bf16.mxu0 0
          %1057 = vmatpush1.bf16.msra.mxu0 0
          %1058 = vmatprep.subr.bf16.mxu0 0
          %1059 = vmatpush1.bf16.msra.mxu0 0
          %1060 = vmatprep.subr.bf16.mxu0 0
          %1061 = vmatpush1.bf16.msra.mxu0 0
          %1062 = vmatprep.subr.bf16.mxu0 0
          %1063 = vmatpush1.bf16.msra.mxu0 0
          %1064 = vmatprep.subr.bf16.mxu0 0
          %1065 = vmatpush1.bf16.msra.mxu0 0
          %1066 = vmatprep.subr.bf16.mxu0 0
          %1067 = vmatpush1.bf16.msra.mxu0 0
          %1068 = vmatprep.subr.bf16.mxu0 0
          %1069 = vmatpush1.bf16.msra.mxu0 0
          %1070 = vmatprep.subr.bf16.mxu0 0
          %1071 = vmatpush1.bf16.msra.mxu0 0
          %1072 = vmatprep.subr.bf16.mxu0 0
          %1073 = vmatpush1.bf16.msra.mxu0 0
          %1074 = vmatprep.subr.bf16.mxu0 0
          %1075 = vmatpush1.bf16.msra.mxu0 0
          %1076 = vmatprep.subr.bf16.mxu0 0
          %1077 = vmatpush1.bf16.msra.mxu0 0
          %1078 = vmatprep.subr.bf16.mxu0 0
          %1079 = vmatpush1.bf16.msra.mxu0 0
          %1080 = vmatprep.mubr.bf16.mxu0 0
          %1081 = vmatmul.mubr.bf16.gmra.mrb[0].mxu0 %v1043
          %v1082 = vpop.f32.mrb[0].mxu0
          %v1083 = vadd.f32 0.0, %v1082
          %v1084 = vpop.f32.mrb[0].mxu0
          %v1085 = vpop.f32.mrb[0].mxu0
          %v1086 = vpop.f32.mrb[0].mxu0
          %1087 = vdwg.mxu0
          %v1089 = vsel %vm948, %v698, 0
          %v1092 = vsel %vm952, %v941, 0
          %1094 = vmatprep.subr.bf16.mxu0 0
          %1095 = vmatpush1.bf16.msra.mxu0 %v1092
          %1096 = vmatprep.subr.bf16.mxu0 0
          %1097 = vmatpush1.bf16.msra.mxu0 0
          %1098 = vmatprep.subr.bf16.mxu0 0
          %1099 = vmatpush1.bf16.msra.mxu0 0
          %1100 = vmatprep.subr.bf16.mxu0 0
          %1101 = vmatpush1.bf16.msra.mxu0 0
          %1102 = vmatprep.subr.bf16.mxu0 0
          %1103 = vmatpush1.bf16.msra.mxu0 0
          %1104 = vmatprep.subr.bf16.mxu0 0
          %1105 = vmatpush1.bf16.msra.mxu0 0
          %1106 = vmatprep.subr.bf16.mxu0 0
          %1107 = vmatpush1.bf16.msra.mxu0 0
          %1108 = vmatprep.subr.bf16.mxu0 0
          %1109 = vmatpush1.bf16.msra.mxu0 0
          %1110 = vmatprep.subr.bf16.mxu0 0
          %1111 = vmatpush1.bf16.msra.mxu0 0
          %1112 = vmatprep.subr.bf16.mxu0 0
          %1113 = vmatpush1.bf16.msra.mxu0 0
          %1114 = vmatprep.subr.bf16.mxu0 0
          %1115 = vmatpush1.bf16.msra.mxu0 0
          %1116 = vmatprep.subr.bf16.mxu0 0
          %1117 = vmatpush1.bf16.msra.mxu0 0
          %1118 = vmatprep.subr.bf16.mxu0 0
          %1119 = vmatpush1.bf16.msra.mxu0 0
          %1120 = vmatprep.subr.bf16.mxu0 0
          %1121 = vmatpush1.bf16.msra.mxu0 0
          %1122 = vmatprep.subr.bf16.mxu0 0
          %1123 = vmatpush1.bf16.msra.mxu0 0
          %1124 = vmatprep.subr.bf16.mxu0 0
          %1125 = vmatpush1.bf16.msra.mxu0 0
          %1126 = vmatprep.mubr.bf16.mxu0 0
          %1127 = vmatmul.mubr.bf16.gmra.mrb[0].mxu0 %v1089
          %v1128 = vpop.f32.mrb[0].mxu0
          %v1129 = vadd.f32 0.0, %v1128
          %v1130 = vpop.f32.mrb[0].mxu0
          %v1131 = vpop.f32.mrb[0].mxu0
          %v1132 = vpop.f32.mrb[0].mxu0
          %1133 = vdwg.mxu0
          %v1134 = vsel %vm948, %v991, -inf
          %1135 = vmax.xlane.f32.xlu0 %v1134
          %v1136 = vpop.xlane.xlu0 %1135
          %v1137 = vsel %vm948, %v1037, -inf
          %1138 = vmax.xlane.f32.xlu0 %v1137
          %v1139 = vpop.xlane.xlu0 %1138
          %v1140 = vsel %vm948, %v1083, -inf
          %1141 = vmax.xlane.f32.xlu0 %v1140
          %v1142 = vpop.xlane.xlu0 %1141
          %v1143 = vsel %vm948, %v1129, -inf
          %1144 = vmax.xlane.f32.xlu0 %v1143
          %v1145 = vpop.xlane.xlu0 %1144
          %v1146 = vmax.f32 %v923, %v1136
          %v1147 = vmax.f32 %v924, %v1139
          %v1148 = vmax.f32 %v925, %v1142
          %v1149 = vmax.f32 %v926, %v1145
          %v1150 = vsub.f32 %v923, %v1146
          %v1151 = vsub.f32 %v924, %v1147
          %v1152 = vsub.f32 %v925, %v1148
          %v1153 = vsub.f32 %v926, %v1149
          %v1154 = vmul.f32 %v1150, 1.442695
          %v1155 = vpow.pop %v1154
          %v1156 = vmul.f32 %v1151, 1.442695
          %v1157 = vpow.pop %v1156
          %v1158 = vmul.f32 %v1152, 1.442695
          %v1159 = vpow.pop %v1158
          %v1160 = vmul.f32 %v1153, 1.442695
          %v1161 = vpow.pop %v1160
          %v1162 = vsub.f32 %v991, %v1146
          %v1163 = vsub.f32 %v1037, %v1147
          %v1164 = vsub.f32 %v1083, %v1148
          %v1165 = vsub.f32 %v1129, %v1149
          %v1166 = vmul.f32 %v1162, 1.442695
          %v1167 = vpow.pop %v1166
          %v1168 = vmul.f32 %v1163, 1.442695
          %v1169 = vpow.pop %v1168
          %v1170 = vmul.f32 %v1164, 1.442695
          %v1171 = vpow.pop %v1170
          %v1172 = vmul.f32 %v1165, 1.442695
          %v1173 = vpow.pop %v1172
          %v1174 = vmul.f32 %v1155, %v927
          %v1175 = vmul.f32 %v1157, %v928
          %v1176 = vmul.f32 %v1159, %v929
          %v1177 = vmul.f32 %v1161, %v930
          %v1178 = vsel %vm948, %v1167, 0.0
          %1179 = vadd.xlane.f32.xlu0 %v1178
          %v1180 = vpop.xlane.xlu0 %1179
          %v1181 = vsel %vm948, %v1169, 0.0
          %1182 = vadd.xlane.f32.xlu0 %v1181
          %v1183 = vpop.xlane.xlu0 %1182
          %v1184 = vsel %vm948, %v1171, 0.0
          %1185 = vadd.xlane.f32.xlu0 %v1184
          %v1186 = vpop.xlane.xlu0 %1185
          %v1187 = vsel %vm948, %v1173, 0.0
          %1188 = vadd.xlane.f32.xlu0 %v1187
          %v1189 = vpop.xlane.xlu0 %1188
          %v1190 = vadd.f32 %v1174, %v1180
          %v1191 = vadd.f32 %v1175, %v1183
          %v1192 = vadd.f32 %v1176, %v1186
          %v1193 = vadd.f32 %v1177, %v1189
          %v1194 = vmul.f32 %v1155, %v931
          %v1195 = vmul.f32 %v1157, %v932
          %v1196 = vmul.f32 %v1159, %v933
          %v1197 = vmul.f32 %v1161, %v934
          %v1198 = vpack.c.bf16 %v1167, %v1167
          %v1199 = vpack.c.bf16 %v1169, %v1169
          %v1200 = vpack.c.bf16 %v1171, %v1171
          %v1201 = vpack.c.bf16 %v1173, %v1173
          %v1203 = vsel %vm948, %v1198, 0
          %v1206 = vsel %vm952, %v944, 0
          %1208 = vmatprep.subr.bf16.mxu0 0
          %1209 = vmatpush1.bf16.msra.mxu0 %v1206
          %1210 = vmatprep.subr.bf16.mxu0 0
          %1211 = vmatpush1.bf16.msra.mxu0 0
          %1212 = vmatprep.subr.bf16.mxu0 0
          %1213 = vmatpush1.bf16.msra.mxu0 0
          %1214 = vmatprep.subr.bf16.mxu0 0
          %1215 = vmatpush1.bf16.msra.mxu0 0
          %1216 = vmatprep.subr.bf16.mxu0 0
          %1217 = vmatpush1.bf16.msra.mxu0 0
          %1218 = vmatprep.subr.bf16.mxu0 0
          %1219 = vmatpush1.bf16.msra.mxu0 0
          %1220 = vmatprep.subr.bf16.mxu0 0
          %1221 = vmatpush1.bf16.msra.mxu0 0
          %1222 = vmatprep.subr.bf16.mxu0 0
          %1223 = vmatpush1.bf16.msra.mxu0 0
          %1224 = vmatprep.subr.bf16.mxu0 0
          %1225 = vmatpush1.bf16.msra.mxu0 0
          %1226 = vmatprep.subr.bf16.mxu0 0
          %1227 = vmatpush1.bf16.msra.mxu0 0
          %1228 = vmatprep.subr.bf16.mxu0 0
          %1229 = vmatpush1.bf16.msra.mxu0 0
          %1230 = vmatprep.subr.bf16.mxu0 0
          %1231 = vmatpush1.bf16.msra.mxu0 0
          %1232 = vmatprep.subr.bf16.mxu0 0
          %1233 = vmatpush1.bf16.msra.mxu0 0
          %1234 = vmatprep.subr.bf16.mxu0 0
          %1235 = vmatpush1.bf16.msra.mxu0 0
          %1236 = vmatprep.subr.bf16.mxu0 0
          %1237 = vmatpush1.bf16.msra.mxu0 0
          %1238 = vmatprep.subr.bf16.mxu0 0
          %1239 = vmatpush1.bf16.msra.mxu0 0
          %1240 = vmatprep.mubr.bf16.mxu0 0
          %1241 = vmatmul.mubr.bf16.gmra.mrb[0].mxu0 %v1203
          %v1242 = vpop.f32.mrb[0].mxu0
          %v1243 = vadd.f32 0.0, %v1242
          %v1244 = vpop.f32.mrb[0].mxu0
          %v1245 = vpop.f32.mrb[0].mxu0
          %v1246 = vpop.f32.mrb[0].mxu0
          %1247 = vdwg.mxu0
          %v1249 = vsel %vm948, %v1199, 0
          %v1252 = vsel %vm952, %v945, 0
          %1254 = vmatprep.subr.bf16.mxu0 0
          %1255 = vmatpush1.bf16.msra.mxu0 %v1252
          %1256 = vmatprep.subr.bf16.mxu0 0
          %1257 = vmatpush1.bf16.msra.mxu0 0
          %1258 = vmatprep.subr.bf16.mxu0 0
          %1259 = vmatpush1.bf16.msra.mxu0 0
          %1260 = vmatprep.subr.bf16.mxu0 0
          %1261 = vmatpush1.bf16.msra.mxu0 0
          %1262 = vmatprep.subr.bf16.mxu0 0
          %1263 = vmatpush1.bf16.msra.mxu0 0
          %1264 = vmatprep.subr.bf16.mxu0 0
          %1265 = vmatpush1.bf16.msra.mxu0 0
          %1266 = vmatprep.subr.bf16.mxu0 0
          %1267 = vmatpush1.bf16.msra.mxu0 0
          %1268 = vmatprep.subr.bf16.mxu0 0
          %1269 = vmatpush1.bf16.msra.mxu0 0
          %1270 = vmatprep.subr.bf16.mxu0 0
          %1271 = vmatpush1.bf16.msra.mxu0 0
          %1272 = vmatprep.subr.bf16.mxu0 0
          %1273 = vmatpush1.bf16.msra.mxu0 0
          %1274 = vmatprep.subr.bf16.mxu0 0
          %1275 = vmatpush1.bf16.msra.mxu0 0
          %1276 = vmatprep.subr.bf16.mxu0 0
          %1277 = vmatpush1.bf16.msra.mxu0 0
          %1278 = vmatprep.subr.bf16.mxu0 0
          %1279 = vmatpush1.bf16.msra.mxu0 0
          %1280 = vmatprep.subr.bf16.mxu0 0
          %1281 = vmatpush1.bf16.msra.mxu0 0
          %1282 = vmatprep.subr.bf16.mxu0 0
          %1283 = vmatpush1.bf16.msra.mxu0 0
          %1284 = vmatprep.subr.bf16.mxu0 0
          %1285 = vmatpush1.bf16.msra.mxu0 0
          %1286 = vmatprep.mubr.bf16.mxu0 0
          %1287 = vmatmul.mubr.bf16.gmra.mrb[0].mxu0 %v1249
          %v1288 = vpop.f32.mrb[0].mxu0
          %v1289 = vadd.f32 0.0, %v1288
          %v1290 = vpop.f32.mrb[0].mxu0
          %v1291 = vpop.f32.mrb[0].mxu0
          %v1292 = vpop.f32.mrb[0].mxu0
          %1293 = vdwg.mxu0
          %v1295 = vsel %vm948, %v1200, 0
          %v1298 = vsel %vm952, %v946, 0
          %1300 = vmatprep.subr.bf16.mxu0 0
          %1301 = vmatpush1.bf16.msra.mxu0 %v1298
          %1302 = vmatprep.subr.bf16.mxu0 0
          %1303 = vmatpush1.bf16.msra.mxu0 0
          %1304 = vmatprep.subr.bf16.mxu0 0
          %1305 = vmatpush1.bf16.msra.mxu0 0
          %1306 = vmatprep.subr.bf16.mxu0 0
          %1307 = vmatpush1.bf16.msra.mxu0 0
          %1308 = vmatprep.subr.bf16.mxu0 0
          %1309 = vmatpush1.bf16.msra.mxu0 0
          %1310 = vmatprep.subr.bf16.mxu0 0
          %1311 = vmatpush1.bf16.msra.mxu0 0
          %1312 = vmatprep.subr.bf16.mxu0 0
          %1313 = vmatpush1.bf16.msra.mxu0 0
          %1314 = vmatprep.subr.bf16.mxu0 0
          %1315 = vmatpush1.bf16.msra.mxu0 0
          %1316 = vmatprep.subr.bf16.mxu0 0
          %1317 = vmatpush1.bf16.msra.mxu0 0
          %1318 = vmatprep.subr.bf16.mxu0 0
          %1319 = vmatpush1.bf16.msra.mxu0 0
          %1320 = vmatprep.subr.bf16.mxu0 0
          %1321 = vmatpush1.bf16.msra.mxu0 0
          %1322 = vmatprep.subr.bf16.mxu0 0
          %1323 = vmatpush1.bf16.msra.mxu0 0
          %1324 = vmatprep.subr.bf16.mxu0 0
          %1325 = vmatpush1.bf16.msra.mxu0 0
          %1326 = vmatprep.subr.bf16.mxu0 0
          %1327 = vmatpush1.bf16.msra.mxu0 0
          %1328 = vmatprep.subr.bf16.mxu0 0
          %1329 = vmatpush1.bf16.msra.mxu0 0
          %1330 = vmatprep.subr.bf16.mxu0 0
          %1331 = vmatpush1.bf16.msra.mxu0 0
          %1332 = vmatprep.mubr.bf16.mxu0 0
          %1333 = vmatmul.mubr.bf16.gmra.mrb[0].mxu0 %v1295
          %v1334 = vpop.f32.mrb[0].mxu0
          %v1335 = vadd.f32 0.0, %v1334
          %v1336 = vpop.f32.mrb[0].mxu0
          %v1337 = vpop.f32.mrb[0].mxu0
          %v1338 = vpop.f32.mrb[0].mxu0
          %1339 = vdwg.mxu0
          %v1341 = vsel %vm948, %v1201, 0
          %v1344 = vsel %vm952, %v947, 0
          %1346 = vmatprep.subr.bf16.mxu0 0
          %1347 = vmatpush1.bf16.msra.mxu0 %v1344
          %1348 = vmatprep.subr.bf16.mxu0 0
          %1349 = vmatpush1.bf16.msra.mxu0 0
          %1350 = vmatprep.subr.bf16.mxu0 0
          %1351 = vmatpush1.bf16.msra.mxu0 0
          %1352 = vmatprep.subr.bf16.mxu0 0
          %1353 = vmatpush1.bf16.msra.mxu0 0
          %1354 = vmatprep.subr.bf16.mxu0 0
          %1355 = vmatpush1.bf16.msra.mxu0 0
          %1356 = vmatprep.subr.bf16.mxu0 0
          %1357 = vmatpush1.bf16.msra.mxu0 0
          %1358 = vmatprep.subr.bf16.mxu0 0
          %1359 = vmatpush1.bf16.msra.mxu0 0
          %1360 = vmatprep.subr.bf16.mxu0 0
          %1361 = vmatpush1.bf16.msra.mxu0 0
          %1362 = vmatprep.subr.bf16.mxu0 0
          %1363 = vmatpush1.bf16.msra.mxu0 0
          %1364 = vmatprep.subr.bf16.mxu0 0
          %1365 = vmatpush1.bf16.msra.mxu0 0
          %1366 = vmatprep.subr.bf16.mxu0 0
          %1367 = vmatpush1.bf16.msra.mxu0 0
          %1368 = vmatprep.subr.bf16.mxu0 0
          %1369 = vmatpush1.bf16.msra.mxu0 0
          %1370 = vmatprep.subr.bf16.mxu0 0
          %1371 = vmatpush1.bf16.msra.mxu0 0
          %1372 = vmatprep.subr.bf16.mxu0 0
          %1373 = vmatpush1.bf16.msra.mxu0 0
          %1374 = vmatprep.subr.bf16.mxu0 0
          %1375 = vmatpush1.bf16.msra.mxu0 0
          %1376 = vmatprep.subr.bf16.mxu0 0
          %1377 = vmatpush1.bf16.msra.mxu0 0
          %1378 = vmatprep.mubr.bf16.mxu0 0
          %1379 = vmatmul.mubr.bf16.gmra.mrb[0].mxu0 %v1341
          %v1380 = vpop.f32.mrb[0].mxu0
          %v1381 = vadd.f32 0.0, %v1380
          %v1382 = vpop.f32.mrb[0].mxu0
          %v1383 = vpop.f32.mrb[0].mxu0
          %v1384 = vpop.f32.mrb[0].mxu0
          %1385 = vdwg.mxu0
          %v1386 = vadd.f32 %v1194, %v1243
          %v1387 = vadd.f32 %v1195, %v1289
          %v1388 = vadd.f32 %v1196, %v1335
          %v1389 = vadd.f32 %v1197, %v1381
        $region73: #{tpu_custom_call.1} parent=67 // loop_footer
          %s920 = sadd.s32 %s918, 1
        $region74: #{tpu_custom_call.1} parent=67 // loop_footer_branch
          %917 = sbr.rel target = $region70
        $region75: #{tpu_custom_call.1} parent=67 // loop_exit
          _
        %vm1390 = vcmask 64512
        %v1392 = vsel %vm1390, %v695, 0
        %vm1394 = vcmask 1043456
        %v1396 = vsel %vm1394, %v875, 0
        %1398 = vmatprep.subr.bf16.mxu0 0
        %1399 = vmatpush1.bf16.msra.mxu0 %v1396
        %1400 = vmatprep.subr.bf16.mxu0 0
        %1401 = vmatpush1.bf16.msra.mxu0 0
        %1402 = vmatprep.subr.bf16.mxu0 0
        %1403 = vmatpush1.bf16.msra.mxu0 0
        %1404 = vmatprep.subr.bf16.mxu0 0
        %1405 = vmatpush1.bf16.msra.mxu0 0
        %1406 = vmatprep.subr.bf16.mxu0 0
        %1407 = vmatpush1.bf16.msra.mxu0 0
        %1408 = vmatprep.subr.bf16.mxu0 0
        %1409 = vmatpush1.bf16.msra.mxu0 0
        %1410 = vmatprep.subr.bf16.mxu0 0
        %1411 = vmatpush1.bf16.msra.mxu0 0
        %1412 = vmatprep.subr.bf16.mxu0 0
        %1413 = vmatpush1.bf16.msra.mxu0 0
        %1414 = vmatprep.subr.bf16.mxu0 0
        %1415 = vmatpush1.bf16.msra.mxu0 0
        %1416 = vmatprep.subr.bf16.mxu0 0
        %1417 = vmatpush1.bf16.msra.mxu0 0
        %1418 = vmatprep.subr.bf16.mxu0 0
        %1419 = vmatpush1.bf16.msra.mxu0 0
        %1420 = vmatprep.subr.bf16.mxu0 0
        %1421 = vmatpush1.bf16.msra.mxu0 0
        %1422 = vmatprep.subr.bf16.mxu0 0
        %1423 = vmatpush1.bf16.msra.mxu0 0
        %1424 = vmatprep.subr.bf16.mxu0 0
        %1425 = vmatpush1.bf16.msra.mxu0 0
        %1426 = vmatprep.subr.bf16.mxu0 0
        %1427 = vmatpush1.bf16.msra.mxu0 0
        %1428 = vmatprep.subr.bf16.mxu0 0
        %1429 = vmatpush1.bf16.msra.mxu0 0
        %1430 = vmatprep.mubr.bf16.mxu0 0
        %1431 = vmatmul.mubr.bf16.gmra.mrb[0].mxu0 %v1392
        %v1432 = vpop.f32.mrb[0].mxu0
        %v1433 = vadd.f32 0.0, %v1432
        %v1434 = vpop.f32.mrb[0].mxu0
        %v1435 = vpop.f32.mrb[0].mxu0
        %v1436 = vpop.f32.mrb[0].mxu0
        %1437 = vdwg.mxu0
        %v1439 = vsel %vm1390, %v696, 0
        %v1442 = vsel %vm1394, %v876, 0
        %1444 = vmatprep.subr.bf16.mxu0 0
        %1445 = vmatpush1.bf16.msra.mxu0 %v1442
        %1446 = vmatprep.subr.bf16.mxu0 0
        %1447 = vmatpush1.bf16.msra.mxu0 0
        %1448 = vmatprep.subr.bf16.mxu0 0
        %1449 = vmatpush1.bf16.msra.mxu0 0
        %1450 = vmatprep.subr.bf16.mxu0 0
        %1451 = vmatpush1.bf16.msra.mxu0 0
        %1452 = vmatprep.subr.bf16.mxu0 0
        %1453 = vmatpush1.bf16.msra.mxu0 0
        %1454 = vmatprep.subr.bf16.mxu0 0
        %1455 = vmatpush1.bf16.msra.mxu0 0
        %1456 = vmatprep.subr.bf16.mxu0 0
        %1457 = vmatpush1.bf16.msra.mxu0 0
        %1458 = vmatprep.subr.bf16.mxu0 0
        %1459 = vmatpush1.bf16.msra.mxu0 0
        %1460 = vmatprep.subr.bf16.mxu0 0
        %1461 = vmatpush1.bf16.msra.mxu0 0
        %1462 = vmatprep.subr.bf16.mxu0 0
        %1463 = vmatpush1.bf16.msra.mxu0 0
        %1464 = vmatprep.subr.bf16.mxu0 0
        %1465 = vmatpush1.bf16.msra.mxu0 0
        %1466 = vmatprep.subr.bf16.mxu0 0
        %1467 = vmatpush1.bf16.msra.mxu0 0
        %1468 = vmatprep.subr.bf16.mxu0 0
        %1469 = vmatpush1.bf16.msra.mxu0 0
        %1470 = vmatprep.subr.bf16.mxu0 0
        %1471 = vmatpush1.bf16.msra.mxu0 0
        %1472 = vmatprep.subr.bf16.mxu0 0
        %1473 = vmatpush1.bf16.msra.mxu0 0
        %1474 = vmatprep.subr.bf16.mxu0 0
        %1475 = vmatpush1.bf16.msra.mxu0 0
        %1476 = vmatprep.mubr.bf16.mxu0 0
        %1477 = vmatmul.mubr.bf16.gmra.mrb[0].mxu0 %v1439
        %v1478 = vpop.f32.mrb[0].mxu0
        %v1479 = vadd.f32 0.0, %v1478
        %v1480 = vpop.f32.mrb[0].mxu0
        %v1481 = vpop.f32.mrb[0].mxu0
        %v1482 = vpop.f32.mrb[0].mxu0
        %1483 = vdwg.mxu0
        %v1485 = vsel %vm1390, %v697, 0
        %v1488 = vsel %vm1394, %v877, 0
        %1490 = vmatprep.subr.bf16.mxu0 0
        %1491 = vmatpush1.bf16.msra.mxu0 %v1488
        %1492 = vmatprep.subr.bf16.mxu0 0
        %1493 = vmatpush1.bf16.msra.mxu0 0
        %1494 = vmatprep.subr.bf16.mxu0 0
        %1495 = vmatpush1.bf16.msra.mxu0 0
        %1496 = vmatprep.subr.bf16.mxu0 0
        %1497 = vmatpush1.bf16.msra.mxu0 0
        %1498 = vmatprep.subr.bf16.mxu0 0
        %1499 = vmatpush1.bf16.msra.mxu0 0
        %1500 = vmatprep.subr.bf16.mxu0 0
        %1501 = vmatpush1.bf16.msra.mxu0 0
        %1502 = vmatprep.subr.bf16.mxu0 0
        %1503 = vmatpush1.bf16.msra.mxu0 0
        %1504 = vmatprep.subr.bf16.mxu0 0
        %1505 = vmatpush1.bf16.msra.mxu0 0
        %1506 = vmatprep.subr.bf16.mxu0 0
        %1507 = vmatpush1.bf16.msra.mxu0 0
        %1508 = vmatprep.subr.bf16.mxu0 0
        %1509 = vmatpush1.bf16.msra.mxu0 0
        %1510 = vmatprep.subr.bf16.mxu0 0
        %1511 = vmatpush1.bf16.msra.mxu0 0
        %1512 = vmatprep.subr.bf16.mxu0 0
        %1513 = vmatpush1.bf16.msra.mxu0 0
        %1514 = vmatprep.subr.bf16.mxu0 0
        %1515 = vmatpush1.bf16.msra.mxu0 0
        %1516 = vmatprep.subr.bf16.mxu0 0
        %1517 = vmatpush1.bf16.msra.mxu0 0
        %1518 = vmatprep.subr.bf16.mxu0 0
        %1519 = vmatpush1.bf16.msra.mxu0 0
        %1520 = vmatprep.subr.bf16.mxu0 0
        %1521 = vmatpush1.bf16.msra.mxu0 0
        %1522 = vmatprep.mubr.bf16.mxu0 0
        %1523 = vmatmul.mubr.bf16.gmra.mrb[0].mxu0 %v1485
        %v1524 = vpop.f32.mrb[0].mxu0
        %v1525 = vadd.f32 0.0, %v1524
        %v1526 = vpop.f32.mrb[0].mxu0
        %v1527 = vpop.f32.mrb[0].mxu0
        %v1528 = vpop.f32.mrb[0].mxu0
        %1529 = vdwg.mxu0
        %v1531 = vsel %vm1390, %v698, 0
        %v1534 = vsel %vm1394, %v878, 0
        %1536 = vmatprep.subr.bf16.mxu0 0
        %1537 = vmatpush1.bf16.msra.mxu0 %v1534
        %1538 = vmatprep.subr.bf16.mxu0 0
        %1539 = vmatpush1.bf16.msra.mxu0 0
        %1540 = vmatprep.subr.bf16.mxu0 0
        %1541 = vmatpush1.bf16.msra.mxu0 0
        %1542 = vmatprep.subr.bf16.mxu0 0
        %1543 = vmatpush1.bf16.msra.mxu0 0
        %1544 = vmatprep.subr.bf16.mxu0 0
        %1545 = vmatpush1.bf16.msra.mxu0 0
        %1546 = vmatprep.subr.bf16.mxu0 0
        %1547 = vmatpush1.bf16.msra.mxu0 0
        %1548 = vmatprep.subr.bf16.mxu0 0
        %1549 = vmatpush1.bf16.msra.mxu0 0
        %1550 = vmatprep.subr.bf16.mxu0 0
        %1551 = vmatpush1.bf16.msra.mxu0 0
        %1552 = vmatprep.subr.bf16.mxu0 0
        %1553 = vmatpush1.bf16.msra.mxu0 0
        %1554 = vmatprep.subr.bf16.mxu0 0
        %1555 = vmatpush1.bf16.msra.mxu0 0
        %1556 = vmatprep.subr.bf16.mxu0 0
        %1557 = vmatpush1.bf16.msra.mxu0 0
        %1558 = vmatprep.subr.bf16.mxu0 0
        %1559 = vmatpush1.bf16.msra.mxu0 0
        %1560 = vmatprep.subr.bf16.mxu0 0
        %1561 = vmatpush1.bf16.msra.mxu0 0
        %1562 = vmatprep.subr.bf16.mxu0 0
        %1563 = vmatpush1.bf16.msra.mxu0 0
        %1564 = vmatprep.subr.bf16.mxu0 0
        %1565 = vmatpush1.bf16.msra.mxu0 0
        %1566 = vmatprep.subr.bf16.mxu0 0
        %1567 = vmatpush1.bf16.msra.mxu0 0
        %1568 = vmatprep.mubr.bf16.mxu0 0
        %1569 = vmatmul.mubr.bf16.gmra.mrb[0].mxu0 %v1531
        %v1570 = vpop.f32.mrb[0].mxu0
        %v1571 = vadd.f32 0.0, %v1570
        %v1572 = vpop.f32.mrb[0].mxu0
        %v1573 = vpop.f32.mrb[0].mxu0
        %v1574 = vpop.f32.mrb[0].mxu0
        %1575 = vdwg.mxu0
        %v1576 = vlaneseq
        %v1577 = vshrl.u32 %v1576, 7
        %v1578 = vlaneseq
        %v1579 = vand.u32 %v1578, 127
        %vm1580 = vcmp.le.s32.totalorder %v1579, %v1577
        %v1581 = vsel %vm1580, 1, 0
        %vm1582 = vcmp.eq.s32.totalorder %v1581, 1
        %v1583 = vsel %vm1582, %v1433, -inf
        %v1584 = vsel %vm1582, %v1479, -inf
        %v1585 = vsel %vm1582, %v1525, -inf
        %v1586 = vsel %vm1582, %v1571, -inf
        %v1587 = vsel %vm1390, %v1583, -inf
        %1588 = vmax.xlane.f32.xlu0 %v1587
        %v1589 = vpop.xlane.xlu0 %1588
        %v1590 = vsel %vm1390, %v1584, -inf
        %1591 = vmax.xlane.f32.xlu0 %v1590
        %v1592 = vpop.xlane.xlu0 %1591
        %v1593 = vsel %vm1390, %v1585, -inf
        %1594 = vmax.xlane.f32.xlu0 %v1593
        %v1595 = vpop.xlane.xlu0 %1594
        %v1596 = vsel %vm1390, %v1586, -inf
        %1597 = vmax.xlane.f32.xlu0 %v1596
        %v1598 = vpop.xlane.xlu0 %1597
        %v1599 = vmax.f32 %v923, %v1589
        %v1600 = vmax.f32 %v924, %v1592
        %v1601 = vmax.f32 %v925, %v1595
        %v1602 = vmax.f32 %v926, %v1598
        %v1603 = vsub.f32 %v923, %v1599
        %v1604 = vsub.f32 %v924, %v1600
        %v1605 = vsub.f32 %v925, %v1601
        %v1606 = vsub.f32 %v926, %v1602
        %v1607 = vmul.f32 %v1603, 1.442695
        %v1608 = vpow.pop %v1607
        %v1609 = vmul.f32 %v1604, 1.442695
        %v1610 = vpow.pop %v1609
        %v1611 = vmul.f32 %v1605, 1.442695
        %v1612 = vpow.pop %v1611
        %v1613 = vmul.f32 %v1606, 1.442695
        %v1614 = vpow.pop %v1613
        %v1615 = vsub.f32 %v1583, %v1599
        %v1616 = vsub.f32 %v1584, %v1600
        %v1617 = vsub.f32 %v1585, %v1601
        %v1618 = vsub.f32 %v1586, %v1602
        %v1619 = vmul.f32 %v1615, 1.442695
        %v1620 = vpow.pop %v1619
        %v1621 = vmul.f32 %v1616, 1.442695
        %v1622 = vpow.pop %v1621
        %v1623 = vmul.f32 %v1617, 1.442695
        %v1624 = vpow.pop %v1623
        %v1625 = vmul.f32 %v1618, 1.442695
        %v1626 = vpow.pop %v1625
        %v1627 = vmul.f32 %v1608, %v927
        %v1628 = vmul.f32 %v1610, %v928
        %v1629 = vmul.f32 %v1612, %v929
        %v1630 = vmul.f32 %v1614, %v930
        %v1631 = vsel %vm1390, %v1620, 0.0
        %1632 = vadd.xlane.f32.xlu0 %v1631
        %v1633 = vpop.xlane.xlu0 %1632
        %v1634 = vsel %vm1390, %v1622, 0.0
        %1635 = vadd.xlane.f32.xlu0 %v1634
        %v1636 = vpop.xlane.xlu0 %1635
        %v1637 = vsel %vm1390, %v1624, 0.0
        %1638 = vadd.xlane.f32.xlu0 %v1637
        %v1639 = vpop.xlane.xlu0 %1638
        %v1640 = vsel %vm1390, %v1626, 0.0
        %1641 = vadd.xlane.f32.xlu0 %v1640
        %v1642 = vpop.xlane.xlu0 %1641
        %v1643 = vadd.f32 %v1627, %v1633
        %v1644 = vadd.f32 %v1628, %v1636
        %v1645 = vadd.f32 %v1629, %v1639
        %v1646 = vadd.f32 %v1630, %v1642
        %v1647 = vmul.f32 %v1608, %v931
        %v1648 = vmul.f32 %v1610, %v932
        %v1649 = vmul.f32 %v1612, %v933
        %v1650 = vmul.f32 %v1614, %v934
        %v1651 = vpack.c.bf16 %v1620, %v1620
        %v1652 = vpack.c.bf16 %v1622, %v1622
        %v1653 = vpack.c.bf16 %v1624, %v1624
        %v1654 = vpack.c.bf16 %v1626, %v1626
        %1655 = vrot.lane.b32.xlu0 %v695, 120
        %v1656 = vpop.permute.xlu0 %1655
        %v1658 = vsel %vm1390, %v1651, 0
        %v1661 = vsel %vm1394, %v1656, 0
        %1663 = vmatprep.subr.bf16.mxu0 0
        %1664 = vmatpush1.bf16.msra.mxu0 %v1661
        %1665 = vmatprep.subr.bf16.mxu0 0
        %1666 = vmatpush1.bf16.msra.mxu0 0
        %1667 = vmatprep.subr.bf16.mxu0 0
        %1668 = vmatpush1.bf16.msra.mxu0 0
        %1669 = vmatprep.subr.bf16.mxu0 0
        %1670 = vmatpush1.bf16.msra.mxu0 0
        %1671 = vmatprep.subr.bf16.mxu0 0
        %1672 = vmatpush1.bf16.msra.mxu0 0
        %1673 = vmatprep.subr.bf16.mxu0 0
        %1674 = vmatpush1.bf16.msra.mxu0 0
        %1675 = vmatprep.subr.bf16.mxu0 0
        %1676 = vmatpush1.bf16.msra.mxu0 0
        %1677 = vmatprep.subr.bf16.mxu0 0
        %1678 = vmatpush1.bf16.msra.mxu0 0
        %1679 = vmatprep.subr.bf16.mxu0 0
        %1680 = vmatpush1.bf16.msra.mxu0 0
        %1681 = vmatprep.subr.bf16.mxu0 0
        %1682 = vmatpush1.bf16.msra.mxu0 0
        %1683 = vmatprep.subr.bf16.mxu0 0
        %1684 = vmatpush1.bf16.msra.mxu0 0
        %1685 = vmatprep.subr.bf16.mxu0 0
        %1686 = vmatpush1.bf16.msra.mxu0 0
        %1687 = vmatprep.subr.bf16.mxu0 0
        %1688 = vmatpush1.bf16.msra.mxu0 0
        %1689 = vmatprep.subr.bf16.mxu0 0
        %1690 = vmatpush1.bf16.msra.mxu0 0
        %1691 = vmatprep.subr.bf16.mxu0 0
        %1692 = vmatpush1.bf16.msra.mxu0 0
        %1693 = vmatprep.subr.bf16.mxu0 0
        %1694 = vmatpush1.bf16.msra.mxu0 0
        %1695 = vmatprep.mubr.bf16.mxu0 0
        %1696 = vmatmul.mubr.bf16.gmra.mrb[0].mxu0 %v1658
        %v1697 = vpop.f32.mrb[0].mxu0
        %v1698 = vadd.f32 0.0, %v1697
        %v1699 = vpop.f32.mrb[0].mxu0
        %v1700 = vpop.f32.mrb[0].mxu0
        %v1701 = vpop.f32.mrb[0].mxu0
        %1702 = vdwg.mxu0
        %1703 = vrot.lane.b32.xlu0 %v696, 120
        %v1704 = vpop.permute.xlu0 %1703
        %v1706 = vsel %vm1390, %v1652, 0
        %v1709 = vsel %vm1394, %v1704, 0
        %1711 = vmatprep.subr.bf16.mxu0 0
        %1712 = vmatpush1.bf16.msra.mxu0 %v1709
        %1713 = vmatprep.subr.bf16.mxu0 0
        %1714 = vmatpush1.bf16.msra.mxu0 0
        %1715 = vmatprep.subr.bf16.mxu0 0
        %1716 = vmatpush1.bf16.msra.mxu0 0
        %1717 = vmatprep.subr.bf16.mxu0 0
        %1718 = vmatpush1.bf16.msra.mxu0 0
        %1719 = vmatprep.subr.bf16.mxu0 0
        %1720 = vmatpush1.bf16.msra.mxu0 0
        %1721 = vmatprep.subr.bf16.mxu0 0
        %1722 = vmatpush1.bf16.msra.mxu0 0
        %1723 = vmatprep.subr.bf16.mxu0 0
        %1724 = vmatpush1.bf16.msra.mxu0 0
        %1725 = vmatprep.subr.bf16.mxu0 0
        %1726 = vmatpush1.bf16.msra.mxu0 0
        %1727 = vmatprep.subr.bf16.mxu0 0
        %1728 = vmatpush1.bf16.msra.mxu0 0
        %1729 = vmatprep.subr.bf16.mxu0 0
        %1730 = vmatpush1.bf16.msra.mxu0 0
        %1731 = vmatprep.subr.bf16.mxu0 0
        %1732 = vmatpush1.bf16.msra.mxu0 0
        %1733 = vmatprep.subr.bf16.mxu0 0
        %1734 = vmatpush1.bf16.msra.mxu0 0
        %1735 = vmatprep.subr.bf16.mxu0 0
        %1736 = vmatpush1.bf16.msra.mxu0 0
        %1737 = vmatprep.subr.bf16.mxu0 0
        %1738 = vmatpush1.bf16.msra.mxu0 0
        %1739 = vmatprep.subr.bf16.mxu0 0
        %1740 = vmatpush1.bf16.msra.mxu0 0
        %1741 = vmatprep.subr.bf16.mxu0 0
        %1742 = vmatpush1.bf16.msra.mxu0 0
        %1743 = vmatprep.mubr.bf16.mxu0 0
        %1744 = vmatmul.mubr.bf16.gmra.mrb[0].mxu0 %v1706
        %v1745 = vpop.f32.mrb[0].mxu0
        %v1746 = vadd.f32 0.0, %v1745
        %v1747 = vpop.f32.mrb[0].mxu0
        %v1748 = vpop.f32.mrb[0].mxu0
        %v1749 = vpop.f32.mrb[0].mxu0
        %1750 = vdwg.mxu0
        %1751 = vrot.lane.b32.xlu0 %v697, 120
        %v1752 = vpop.permute.xlu0 %1751
        %v1754 = vsel %vm1390, %v1653, 0
        %v1757 = vsel %vm1394, %v1752, 0
        %1759 = vmatprep.subr.bf16.mxu0 0
        %1760 = vmatpush1.bf16.msra.mxu0 %v1757
        %1761 = vmatprep.subr.bf16.mxu0 0
        %1762 = vmatpush1.bf16.msra.mxu0 0
        %1763 = vmatprep.subr.bf16.mxu0 0
        %1764 = vmatpush1.bf16.msra.mxu0 0
        %1765 = vmatprep.subr.bf16.mxu0 0
        %1766 = vmatpush1.bf16.msra.mxu0 0
        %1767 = vmatprep.subr.bf16.mxu0 0
        %1768 = vmatpush1.bf16.msra.mxu0 0
        %1769 = vmatprep.subr.bf16.mxu0 0
        %1770 = vmatpush1.bf16.msra.mxu0 0
        %1771 = vmatprep.subr.bf16.mxu0 0
        %1772 = vmatpush1.bf16.msra.mxu0 0
        %1773 = vmatprep.subr.bf16.mxu0 0
        %1774 = vmatpush1.bf16.msra.mxu0 0
        %1775 = vmatprep.subr.bf16.mxu0 0
        %1776 = vmatpush1.bf16.msra.mxu0 0
        %1777 = vmatprep.subr.bf16.mxu0 0
        %1778 = vmatpush1.bf16.msra.mxu0 0
        %1779 = vmatprep.subr.bf16.mxu0 0
        %1780 = vmatpush1.bf16.msra.mxu0 0
        %1781 = vmatprep.subr.bf16.mxu0 0
        %1782 = vmatpush1.bf16.msra.mxu0 0
        %1783 = vmatprep.subr.bf16.mxu0 0
        %1784 = vmatpush1.bf16.msra.mxu0 0
        %1785 = vmatprep.subr.bf16.mxu0 0
        %1786 = vmatpush1.bf16.msra.mxu0 0
        %1787 = vmatprep.subr.bf16.mxu0 0
        %1788 = vmatpush1.bf16.msra.mxu0 0
        %1789 = vmatprep.subr.bf16.mxu0 0
        %1790 = vmatpush1.bf16.msra.mxu0 0
        %1791 = vmatprep.mubr.bf16.mxu0 0
        %1792 = vmatmul.mubr.bf16.gmra.mrb[0].mxu0 %v1754
        %v1793 = vpop.f32.mrb[0].mxu0
        %v1794 = vadd.f32 0.0, %v1793
        %v1795 = vpop.f32.mrb[0].mxu0
        %v1796 = vpop.f32.mrb[0].mxu0
        %v1797 = vpop.f32.mrb[0].mxu0
        %1798 = vdwg.mxu0
        %1799 = vrot.lane.b32.xlu0 %v698, 120
        %v1800 = vpop.permute.xlu0 %1799
        %v1802 = vsel %vm1390, %v1654, 0
        %v1805 = vsel %vm1394, %v1800, 0
        %1807 = vmatprep.subr.bf16.mxu0 0
        %1808 = vmatpush1.bf16.msra.mxu0 %v1805
        %1809 = vmatprep.subr.bf16.mxu0 0
        %1810 = vmatpush1.bf16.msra.mxu0 0
        %1811 = vmatprep.subr.bf16.mxu0 0
        %1812 = vmatpush1.bf16.msra.mxu0 0
        %1813 = vmatprep.subr.bf16.mxu0 0
        %1814 = vmatpush1.bf16.msra.mxu0 0
        %1815 = vmatprep.subr.bf16.mxu0 0
        %1816 = vmatpush1.bf16.msra.mxu0 0
        %1817 = vmatprep.subr.bf16.mxu0 0
        %1818 = vmatpush1.bf16.msra.mxu0 0
        %1819 = vmatprep.subr.bf16.mxu0 0
        %1820 = vmatpush1.bf16.msra.mxu0 0
        %1821 = vmatprep.subr.bf16.mxu0 0
        %1822 = vmatpush1.bf16.msra.mxu0 0
        %1823 = vmatprep.subr.bf16.mxu0 0
        %1824 = vmatpush1.bf16.msra.mxu0 0
        %1825 = vmatprep.subr.bf16.mxu0 0
        %1826 = vmatpush1.bf16.msra.mxu0 0
        %1827 = vmatprep.subr.bf16.mxu0 0
        %1828 = vmatpush1.bf16.msra.mxu0 0
        %1829 = vmatprep.subr.bf16.mxu0 0
        %1830 = vmatpush1.bf16.msra.mxu0 0
        %1831 = vmatprep.subr.bf16.mxu0 0
        %1832 = vmatpush1.bf16.msra.mxu0 0
        %1833 = vmatprep.subr.bf16.mxu0 0
        %1834 = vmatpush1.bf16.msra.mxu0 0
        %1835 = vmatprep.subr.bf16.mxu0 0
        %1836 = vmatpush1.bf16.msra.mxu0 0
        %1837 = vmatprep.subr.bf16.mxu0 0
        %1838 = vmatpush1.bf16.msra.mxu0 0
        %1839 = vmatprep.mubr.bf16.mxu0 0
        %1840 = vmatmul.mubr.bf16.gmra.mrb[0].mxu0 %v1802
        %v1841 = vpop.f32.mrb[0].mxu0
        %v1842 = vadd.f32 0.0, %v1841
        %v1843 = vpop.f32.mrb[0].mxu0
        %v1844 = vpop.f32.mrb[0].mxu0
        %v1845 = vpop.f32.mrb[0].mxu0
        %1846 = vdwg.mxu0
        %v1847 = vadd.f32 %v1647, %v1698
        %v1848 = vadd.f32 %v1648, %v1746
        %v1849 = vadd.f32 %v1649, %v1794
        %v1850 = vadd.f32 %v1650, %v1842
        %v1851 = vrcp.pop %v1643
        %v1852 = vrcp.pop %v1644
        %v1853 = vrcp.pop %v1645
        %v1854 = vrcp.pop %v1646
        %v1855 = vmul.f32 %v1847, %v1851
        %v1856 = vmul.f32 %v1848, %v1852
        %v1857 = vmul.f32 %v1849, %v1853
        %v1858 = vmul.f32 %v1850, %v1854
        %v1859 = vpack.c.bf16 %v1855, %v1855
        %v1860 = vpack.c.bf16 %v1856, %v1856
        %v1861 = vpack.c.bf16 %v1857, %v1857
        %v1862 = vpack.c.bf16 %v1858, %v1858
        %v1863 = vld [vmem:[%s5] sm:$0xf]
        %s1864 = scalar_lea.vmem %s5, 4
        %v1865 = vld [vmem:[%s1864] sm:$0xf]
        %v1867 = vsel %vm1390, %v1860, 0
        %v1870 = vsel %vm1394, %v1865, 0
        %1872 = vmatprep.subr.bf16.mxu0 0
        %1873 = vmatpush1.bf16.msra.mxu0 %v1870
        %1874 = vmatprep.subr.bf16.mxu0 0
        %1875 = vmatpush1.bf16.msra.mxu0 0
        %1876 = vmatprep.subr.bf16.mxu0 0
        %1877 = vmatpush1.bf16.msra.mxu0 0
        %1878 = vmatprep.subr.bf16.mxu0 0
        %1879 = vmatpush1.bf16.msra.mxu0 0
        %1880 = vmatprep.subr.bf16.mxu0 0
        %1881 = vmatpush1.bf16.msra.mxu0 0
        %1882 = vmatprep.subr.bf16.mxu0 0
        %1883 = vmatpush1.bf16.msra.mxu0 0
        %1884 = vmatprep.subr.bf16.mxu0 0
        %1885 = vmatpush1.bf16.msra.mxu0 0
        %1886 = vmatprep.subr.bf16.mxu0 0
        %1887 = vmatpush1.bf16.msra.mxu0 0
        %1888 = vmatprep.subr.bf16.mxu0 0
        %1889 = vmatpush1.bf16.msra.mxu0 0
        %1890 = vmatprep.subr.bf16.mxu0 0
        %1891 = vmatpush1.bf16.msra.mxu0 0
        %1892 = vmatprep.subr.bf16.mxu0 0
        %1893 = vmatpush1.bf16.msra.mxu0 0
        %1894 = vmatprep.subr.bf16.mxu0 0
        %1895 = vmatpush1.bf16.msra.mxu0 0
        %1896 = vmatprep.subr.bf16.mxu0 0
        %1897 = vmatpush1.bf16.msra.mxu0 0
        %1898 = vmatprep.subr.bf16.mxu0 0
        %1899 = vmatpush1.bf16.msra.mxu0 0
        %1900 = vmatprep.subr.bf16.mxu0 0
        %1901 = vmatpush1.bf16.msra.mxu0 0
        %1902 = vmatprep.subr.bf16.mxu0 0
        %1903 = vmatpush1.bf16.msra.mxu0 0
        %1904 = vmatprep.mubr.bf16.mxu0 0
        %1905 = vmatmul.mubr.bf16.gmra.mrb[0].mxu0 %v1867
        %v1906 = vpop.f32.mrb[0].mxu0
        %v1907 = vadd.f32 0.0, %v1906
        %v1908 = vpop.f32.mrb[0].mxu0
        %v1909 = vpop.f32.mrb[0].mxu0
        %v1910 = vpop.f32.mrb[0].mxu0
        %1911 = vdwg.mxu0
        %v1913 = vsel %vm1390, %v1859, 0
        %v1916 = vsel %vm1394, %v1863, 0
        %1918 = vmatprep.subr.bf16.mxu0 0
        %1919 = vmatpush1.bf16.msra.mxu0 %v1916
        %1920 = vmatprep.subr.bf16.mxu0 0
        %1921 = vmatpush1.bf16.msra.mxu0 0
        %1922 = vmatprep.subr.bf16.mxu0 0
        %1923 = vmatpush1.bf16.msra.mxu0 0
        %1924 = vmatprep.subr.bf16.mxu0 0
        %1925 = vmatpush1.bf16.msra.mxu0 0
        %1926 = vmatprep.subr.bf16.mxu0 0
        %1927 = vmatpush1.bf16.msra.mxu0 0
        %1928 = vmatprep.subr.bf16.mxu0 0
        %1929 = vmatpush1.bf16.msra.mxu0 0
        %1930 = vmatprep.subr.bf16.mxu0 0
        %1931 = vmatpush1.bf16.msra.mxu0 0
        %1932 = vmatprep.subr.bf16.mxu0 0
        %1933 = vmatpush1.bf16.msra.mxu0 0
        %1934 = vmatprep.subr.bf16.mxu0 0
        %1935 = vmatpush1.bf16.msra.mxu0 0
        %1936 = vmatprep.subr.bf16.mxu0 0
        %1937 = vmatpush1.bf16.msra.mxu0 0
        %1938 = vmatprep.subr.bf16.mxu0 0
        %1939 = vmatpush1.bf16.msra.mxu0 0
        %1940 = vmatprep.subr.bf16.mxu0 0
        %1941 = vmatpush1.bf16.msra.mxu0 0
        %1942 = vmatprep.subr.bf16.mxu0 0
        %1943 = vmatpush1.bf16.msra.mxu0 0
        %1944 = vmatprep.subr.bf16.mxu0 0
        %1945 = vmatpush1.bf16.msra.mxu0 0
        %1946 = vmatprep.subr.bf16.mxu0 0
        %1947 = vmatpush1.bf16.msra.mxu0 0
        %1948 = vmatprep.subr.bf16.mxu0 0
        %1949 = vmatpush1.bf16.msra.mxu0 0
        %1950 = vmatprep.mubr.bf16.mxu0 0
        %1951 = vmatmul.mubr.bf16.gmra.mrb[0].mxu0 %v1913
        %v1952 = vpop.f32.mrb[0].mxu0
        %v1953 = vadd.f32 %v1907, %v1952
        %v1954 = vpop.f32.mrb[0].mxu0
        %v1955 = vpop.f32.mrb[0].mxu0
        %v1956 = vpop.f32.mrb[0].mxu0
        %1957 = vdwg.mxu0
        %s1958 = scalar_lea.vmem %s5, 8
        %v1959 = vld [vmem:[%s1958] sm:$0xf]
        %v1961 = vsel %vm1390, %v1861, 0
        %v1964 = vsel %vm1394, %v1959, 0
        %1966 = vmatprep.subr.bf16.mxu0 0
        %1967 = vmatpush1.bf16.msra.mxu0 %v1964
        %1968 = vmatprep.subr.bf16.mxu0 0
        %1969 = vmatpush1.bf16.msra.mxu0 0
        %1970 = vmatprep.subr.bf16.mxu0 0
        %1971 = vmatpush1.bf16.msra.mxu0 0
        %1972 = vmatprep.subr.bf16.mxu0 0
        %1973 = vmatpush1.bf16.msra.mxu0 0
        %1974 = vmatprep.subr.bf16.mxu0 0
        %1975 = vmatpush1.bf16.msra.mxu0 0
        %1976 = vmatprep.subr.bf16.mxu0 0
        %1977 = vmatpush1.bf16.msra.mxu0 0
        %1978 = vmatprep.subr.bf16.mxu0 0
        %1979 = vmatpush1.bf16.msra.mxu0 0
        %1980 = vmatprep.subr.bf16.mxu0 0
        %1981 = vmatpush1.bf16.msra.mxu0 0
        %1982 = vmatprep.subr.bf16.mxu0 0
        %1983 = vmatpush1.bf16.msra.mxu0 0
        %1984 = vmatprep.subr.bf16.mxu0 0
        %1985 = vmatpush1.bf16.msra.mxu0 0
        %1986 = vmatprep.subr.bf16.mxu0 0
        %1987 = vmatpush1.bf16.msra.mxu0 0
        %1988 = vmatprep.subr.bf16.mxu0 0
        %1989 = vmatpush1.bf16.msra.mxu0 0
        %1990 = vmatprep.subr.bf16.mxu0 0
        %1991 = vmatpush1.bf16.msra.mxu0 0
        %1992 = vmatprep.subr.bf16.mxu0 0
        %1993 = vmatpush1.bf16.msra.mxu0 0
        %1994 = vmatprep.subr.bf16.mxu0 0
        %1995 = vmatpush1.bf16.msra.mxu0 0
        %1996 = vmatprep.subr.bf16.mxu0 0
        %1997 = vmatpush1.bf16.msra.mxu0 0
        %1998 = vmatprep.mubr.bf16.mxu0 0
        %1999 = vmatmul.mubr.bf16.gmra.mrb[0].mxu0 %v1961
        %v2000 = vpop.f32.mrb[0].mxu0
        %v2001 = vadd.f32 0.0, %v2000
        %v2002 = vpop.f32.mrb[0].mxu0
        %v2003 = vpop.f32.mrb[0].mxu0
        %v2004 = vpop.f32.mrb[0].mxu0
        %2005 = vdwg.mxu0
        %v2006 = vadd.f32 %v1953, %v2001
        %s2007 = scalar_lea.vmem %s5, 12
        %v2008 = vld [vmem:[%s2007] sm:$0xf]
        %v2010 = vsel %vm1390, %v1862, 0
        %v2013 = vsel %vm1394, %v2008, 0
        %2015 = vmatprep.subr.bf16.mxu0 0
        %2016 = vmatpush1.bf16.msra.mxu0 %v2013
        %2017 = vmatprep.subr.bf16.mxu0 0
        %2018 = vmatpush1.bf16.msra.mxu0 0
        %2019 = vmatprep.subr.bf16.mxu0 0
        %2020 = vmatpush1.bf16.msra.mxu0 0
        %2021 = vmatprep.subr.bf16.mxu0 0
        %2022 = vmatpush1.bf16.msra.mxu0 0
        %2023 = vmatprep.subr.bf16.mxu0 0
        %2024 = vmatpush1.bf16.msra.mxu0 0
        %2025 = vmatprep.subr.bf16.mxu0 0
        %2026 = vmatpush1.bf16.msra.mxu0 0
        %2027 = vmatprep.subr.bf16.mxu0 0
        %2028 = vmatpush1.bf16.msra.mxu0 0
        %2029 = vmatprep.subr.bf16.mxu0 0
        %2030 = vmatpush1.bf16.msra.mxu0 0
        %2031 = vmatprep.subr.bf16.mxu0 0
        %2032 = vmatpush1.bf16.msra.mxu0 0
        %2033 = vmatprep.subr.bf16.mxu0 0
        %2034 = vmatpush1.bf16.msra.mxu0 0
        %2035 = vmatprep.subr.bf16.mxu0 0
        %2036 = vmatpush1.bf16.msra.mxu0 0
        %2037 = vmatprep.subr.bf16.mxu0 0
        %2038 = vmatpush1.bf16.msra.mxu0 0
        %2039 = vmatprep.subr.bf16.mxu0 0
        %2040 = vmatpush1.bf16.msra.mxu0 0
        %2041 = vmatprep.subr.bf16.mxu0 0
        %2042 = vmatpush1.bf16.msra.mxu0 0
        %2043 = vmatprep.subr.bf16.mxu0 0
        %2044 = vmatpush1.bf16.msra.mxu0 0
        %2045 = vmatprep.subr.bf16.mxu0 0
        %2046 = vmatpush1.bf16.msra.mxu0 0
        %2047 = vmatprep.mubr.bf16.mxu0 0
        %2048 = vmatmul.mubr.bf16.gmra.mrb[0].mxu0 %v2010
        %v2049 = vpop.f32.mrb[0].mxu0
        %v2050 = vadd.f32 0.0, %v2049
        %v2051 = vpop.f32.mrb[0].mxu0
        %v2052 = vpop.f32.mrb[0].mxu0
        %v2053 = vpop.f32.mrb[0].mxu0
        %2054 = vdwg.mxu0
        %v2055 = vadd.f32 %v2006, %v2050
        %v2056 = vadd.f32 %v435, %v2055
        %v2057 = vld [vmem:[%s6] sm:$0x1]
        %v2058 = vld [vmem:[%s7] sm:$0x1]
        %v2059 = vsel %vm438, %v2056, 0.0
        %2060 = vadd.xlane.f32.xlu0 %v2059
        %v2061 = vpop.xlane.xlu0 %2060
        %v2062 = vmul.f32 %v2061, %v442
        %v2063 = vsub.f32 %v2056, %v2062
        %v2064 = vmul.f32 %v2063, %v2063
        %v2065 = vsel %vm438, %v2064, 0.0
        %2066 = vadd.xlane.f32.xlu0 %v2065
        %v2067 = vpop.xlane.xlu0 %2066
        %v2068 = vmul.f32 %v2067, %v442
        %v2069 = vadd.f32 %v2068, 1e-05
        %v2070 = vrsqrt.pop %v2069
        %v2071 = vmul.f32 %v2063, %v2070
        %v2073 = vlaneseq
        %v2074 = vshrl.u32 %v2073, 7
        %v2075 = vsub.s32 0, %v2074
        %v2076 = vrot.slane %v2057, %v2075
        %v2078 = vmul.f32 %v2071, %v2076
        %v2080 = vlaneseq
        %v2081 = vshrl.u32 %v2080, 7
        %v2082 = vsub.s32 0, %v2081
        %v2083 = vrot.slane %v2058, %v2082
        %v2085 = vadd.f32 %v2078, %v2083
        %v2086 = vpack.c.bf16 %v2085, %v2085
        %v2087 = vld [vmem:[%s8] sm:$0xf]
        %v2088 = vld [vmem:[%s8 + $0x4] sm:$0xf]
        %v2089 = vld [vmem:[%s8 + $0x8] sm:$0xf]
        %v2090 = vld [vmem:[%s8 + $0xc] sm:$0xf]
        %v2091 = vld [vmem:[%s9] sm:$0x1]
        %v2093 = vlaneseq
        %v2094 = vshrl.u32 %v2093, 7
        %v2095 = vsub.s32 0, %v2094
        %v2096 = vrot.slane %v2091, %v2095
        %v2102 = vunpack.c.l.b16 %v2087
        %v2103 = vunpack.c.l.b16 %v2088
        %v2104 = vunpack.c.l.b16 %v2089
        %v2105 = vunpack.c.l.b16 %v2090
        %v2106 = vpack.c.b16 %v2103, %v2102
        %v2107 = vpack.c.b16 %v2105, %v2104
        %v2111 = vsel %vm438, %v2086, 0
        %2113 = vmatprep.subr.bf16.mxu0 0
        %2114 = vmatpush1.bf16.msra.mxu0 %v2106
        %2115 = vmatprep.subr.bf16.mxu0 0
        %2116 = vmatpush1.bf16.msra.mxu0 %v2107
        %2117 = vmatprep.subr.bf16.mxu0 0
        %2118 = vmatpush1.bf16.msra.mxu0 0
        %2119 = vmatprep.subr.bf16.mxu0 0
        %2120 = vmatpush1.bf16.msra.mxu0 0
        %2121 = vmatprep.subr.bf16.mxu0 0
        %2122 = vmatpush1.bf16.msra.mxu0 0
        %2123 = vmatprep.subr.bf16.mxu0 0
        %2124 = vmatpush1.bf16.msra.mxu0 0
        %2125 = vmatprep.subr.bf16.mxu0 0
        %2126 = vmatpush1.bf16.msra.mxu0 0
        %2127 = vmatprep.subr.bf16.mxu0 0
        %2128 = vmatpush1.bf16.msra.mxu0 0
        %2129 = vmatprep.subr.bf16.mxu0 0
        %2130 = vmatpush1.bf16.msra.mxu0 0
        %2131 = vmatprep.subr.bf16.mxu0 0
        %2132 = vmatpush1.bf16.msra.mxu0 0
        %2133 = vmatprep.subr.bf16.mxu0 0
        %2134 = vmatpush1.bf16.msra.mxu0 0
        %2135 = vmatprep.subr.bf16.mxu0 0
        %2136 = vmatpush1.bf16.msra.mxu0 0
        %2137 = vmatprep.subr.bf16.mxu0 0
        %2138 = vmatpush1.bf16.msra.mxu0 0
        %2139 = vmatprep.subr.bf16.mxu0 0
        %2140 = vmatpush1.bf16.msra.mxu0 0
        %2141 = vmatprep.subr.bf16.mxu0 0
        %2142 = vmatpush1.bf16.msra.mxu0 0
        %2143 = vmatprep.subr.bf16.mxu0 0
        %2144 = vmatpush1.bf16.msra.mxu0 0
        %2145 = vmatprep.mubr.bf16.mxu0 0
        %2146 = vmatmul.mubr.bf16.gmra.mrb[0].mxu0 %v2111
        %v2147 = vpop.f32.mrb[0].mxu0
        %v2148 = vadd.f32 %v2096, %v2147
        %v2149 = vpop.f32.mrb[0].mxu0
        %v2150 = vpop.f32.mrb[0].mxu0
        %v2151 = vpop.f32.mrb[0].mxu0
        %2152 = vdwg.mxu0
        %v2153 = vmax.f32 %v2148, 0.0
        %v2154 = vpack.c.bf16 %v2153, %v2153
        %v2155 = vld [vmem:[%s10] sm:$0xf]
        %v2156 = vld [vmem:[%s10 + $0x4] sm:$0xf]
        %v2157 = vld [vmem:[%s10 + $0x8] sm:$0xf]
        %v2158 = vld [vmem:[%s10 + $0xc] sm:$0xf]
        %v2159 = vld [vmem:[%s10 + $0x10] sm:$0xf]
        %v2160 = vld [vmem:[%s10 + $0x14] sm:$0xf]
        %v2161 = vld [vmem:[%s10 + $0x18] sm:$0xf]
        %v2162 = vld [vmem:[%s10 + $0x1c] sm:$0xf]
        %v2163 = vld [vmem:[%s10 + $0x20] sm:$0xf]
        %v2164 = vld [vmem:[%s10 + $0x24] sm:$0xf]
        %v2165 = vld [vmem:[%s10 + $0x28] sm:$0xf]
        %v2166 = vld [vmem:[%s10 + $0x2c] sm:$0xf]
        %v2167 = vld [vmem:[%s10 + $0x30] sm:$0xf]
        %v2168 = vld [vmem:[%s10 + $0x34] sm:$0xf]
        %v2169 = vld [vmem:[%s10 + $0x38] sm:$0xf]
        %v2170 = vld [vmem:[%s10 + $0x3c] sm:$0xf]
        %v2171 = vld [vmem:[%s11] sm:$0x1]
        %v2173 = vlaneseq
        %v2174 = vshrl.u32 %v2173, 7
        %v2175 = vsub.s32 0, %v2174
        %v2176 = vrot.slane %v2171, %v2175
        %v2194 = vunpack.c.l.b16 %v2155
        %v2195 = vunpack.c.l.b16 %v2156
        %v2196 = vunpack.c.l.b16 %v2157
        %v2197 = vunpack.c.l.b16 %v2158
        %v2198 = vunpack.c.l.b16 %v2159
        %v2199 = vunpack.c.l.b16 %v2160
        %v2200 = vunpack.c.l.b16 %v2161
        %v2201 = vunpack.c.l.b16 %v2162
        %v2202 = vunpack.c.l.b16 %v2163
        %v2203 = vunpack.c.l.b16 %v2164
        %v2204 = vunpack.c.l.b16 %v2165
        %v2205 = vunpack.c.l.b16 %v2166
        %v2206 = vunpack.c.l.b16 %v2167
        %v2207 = vunpack.c.l.b16 %v2168
        %v2208 = vunpack.c.l.b16 %v2169
        %v2209 = vunpack.c.l.b16 %v2170
        %v2210 = vpack.c.b16 %v2195, %v2194
        %v2211 = vpack.c.b16 %v2197, %v2196
        %v2212 = vpack.c.b16 %v2199, %v2198
        %v2213 = vpack.c.b16 %v2201, %v2200
        %v2214 = vpack.c.b16 %v2203, %v2202
        %v2215 = vpack.c.b16 %v2205, %v2204
        %v2216 = vpack.c.b16 %v2207, %v2206
        %v2217 = vpack.c.b16 %v2209, %v2208
        %2226 = vmatprep.subr.bf16.mxu0 0
        %2227 = vmatpush1.bf16.msra.mxu0 %v2210
        %2228 = vmatprep.subr.bf16.mxu0 0
        %2229 = vmatpush1.bf16.msra.mxu0 %v2211
        %2230 = vmatprep.subr.bf16.mxu0 0
        %2231 = vmatpush1.bf16.msra.mxu0 %v2212
        %2232 = vmatprep.subr.bf16.mxu0 0
        %2233 = vmatpush1.bf16.msra.mxu0 %v2213
        %2234 = vmatprep.subr.bf16.mxu0 0
        %2235 = vmatpush1.bf16.msra.mxu0 %v2214
        %2236 = vmatprep.subr.bf16.mxu0 0
        %2237 = vmatpush1.bf16.msra.mxu0 %v2215
        %2238 = vmatprep.subr.bf16.mxu0 0
        %2239 = vmatpush1.bf16.msra.mxu0 %v2216
        %2240 = vmatprep.subr.bf16.mxu0 0
        %2241 = vmatpush1.bf16.msra.mxu0 %v2217
        %2242 = vmatprep.subr.bf16.mxu0 0
        %2243 = vmatpush1.bf16.msra.mxu0 0
        %2244 = vmatprep.subr.bf16.mxu0 0
        %2245 = vmatpush1.bf16.msra.mxu0 0
        %2246 = vmatprep.subr.bf16.mxu0 0
        %2247 = vmatpush1.bf16.msra.mxu0 0
        %2248 = vmatprep.subr.bf16.mxu0 0
        %2249 = vmatpush1.bf16.msra.mxu0 0
        %2250 = vmatprep.subr.bf16.mxu0 0
        %2251 = vmatpush1.bf16.msra.mxu0 0
        %2252 = vmatprep.subr.bf16.mxu0 0
        %2253 = vmatpush1.bf16.msra.mxu0 0
        %2254 = vmatprep.subr.bf16.mxu0 0
        %2255 = vmatpush1.bf16.msra.mxu0 0
        %2256 = vmatprep.subr.bf16.mxu0 0
        %2257 = vmatpush1.bf16.msra.mxu0 0
        %2258 = vmatprep.mubr.bf16.mxu0 0
        %2259 = vmatmul.mubr.bf16.gmra.mrb[0].mxu0 %v2154
        %v2260 = vpop.f32.mrb[0].mxu0
        %v2261 = vadd.f32 %v2176, %v2260
        %v2262 = vpop.f32.mrb[0].mxu0
        %v2263 = vpop.f32.mrb[0].mxu0
        %v2264 = vpop.f32.mrb[0].mxu0
        %2265 = vdwg.mxu0
        %v2266 = vadd.f32 %v2056, %v2261
        %2267 = vst.msk [vmem:[%s426] sm:$0xff] %vm438, %v2266
        %s2268 = sand.u32 %s307, 1
        %s2269 = scalar_lea.sflag [#allocation5], %s2268
        %s2270 = sand.u32 %s307, 1
        %s2271 = smul.addr %s2270, 8
        %s2272 = scalar_lea.vmem [#allocation4], %s2271
        // Predicated region
        $region76: #{tpu_custom_call.1} parent=67 // pred_check
          %p2273 = pneg %p317
        $region77: #{tpu_custom_call.1} parent=67 // pred_check_branch
          %2275 = sbr.rel (%p2273) target = $region79
        $region78: #{tpu_custom_call.1} parent=67 // pred_region
          %s2277 = ssub.s32 128, 128
          %2278 = vsyncadd %s2269, %s2277
          %s2279 = sadd.s32 %s31, %s30
          %s2280 = smul.addr %s2279, 128
          %s2281 = scalar_lea.hbm %s12, %s2280
          %s2283 = sshll.u32 %s2272, 4
          %s2284 = int_to_ptr.vmem [resolvable:$true] %s2283
          %2286 = dma.vmem_to_hbm [thread:$0]  %s2284, 128, %s2281, %s2269
        $region79: #{tpu_custom_call.1} parent=67 // pred_fallthru
          _
      $region68: #{tpu_custom_call.1} parent=5 // pred_fallthru
        _
      %p2287 = scmp.le.s32.totalorder 2, %s21
      // Predicated region
      $region80: #{tpu_custom_call.1} parent=5 // pred_check
        %p2288 = pneg %p2287
      $region81: #{tpu_custom_call.1} parent=5 // pred_check_branch
        %2290 = sbr.rel (%p2288) target = $region83
      $region82: #{tpu_custom_call.1} parent=5 // pred_region
        %s2291 = ssub.s32 %s21, 2
        // Predicated region
        $region84: #{tpu_custom_call.1} parent=82 // pred_check
          %p2292 = pneg %p323
        $region85: #{tpu_custom_call.1} parent=82 // pred_check_branch
          %2294 = sbr.rel (%p2292) target = $region87
        $region86: #{tpu_custom_call.1} parent=82 // pred_region
          %s2295 = sand.u32 %s308, 1
          %s2296 = scalar_lea.sflag [#allocation5], %s2295
          %s2297 = sand.u32 %s308, 1
          %s2298 = smul.addr %s2297, 8
          %s2299 = scalar_lea.vmem [#allocation4], %s2298
          %2300 = dma.done %s2296, 128
        $region87: #{tpu_custom_call.1} parent=82 // pred_fallthru
          _
      $region83: #{tpu_custom_call.1} parent=5 // pred_fallthru
        _
    $region6: #{tpu_custom_call.1} parent=1 // loop_footer
      %s25 = sadd.s32 1, %s21
    $region7: #{tpu_custom_call.1} parent=1 // loop_footer_branch
      %20 = sbr.rel target = $region3
    $region8: #{tpu_custom_call.1} parent=1 // loop_exit
      _
    %2301 = vsyncpa [#allocation5], 1
    %s2302 = scalar_lea.sflag [#allocation5], 1
    %2303 = vsyncpa %s2302, 1

</llo_original>
